<compile_context>
chip_gen: v5e
topology: v5e:2x2
jax: 0.10.0
libtpu: 0.0.40
codegen_flags: <defaults>
</compile_context>

<pallas_src>
import numpy as np
import jax
import jax.numpy as jnp
from jax import lax
from jax.experimental import pallas as pl
from jax.experimental.pallas import tpu as pltpu

EPS = 1e-5          # PyTorch BatchNorm1d default eps
LEAKY_SLOPE = 0.01  # PyTorch LeakyReLU default negative_slope


def _round_up(a, b):
    return (a + b - 1) // b * b


# ---------------------------------------------------------------------------
# Kernel 1: 2-layer GRU over time for one batch tile; returns last hidden of
# layer 2.  Weights packed as (in_dim, 3H), gate column order [r | z | n].
#   bi*  : (1, 3H)  with  [bi_r+bh_r, bi_z+bh_z, bi_n]   (r/z biases folded)
#   bhn* : (1, H)   with  bh_n (needed separately because of r * (h@Wh_n + bh_n))
# ---------------------------------------------------------------------------
def gru_kernel(x_ref,
               wi0_ref, wh0_ref, bi0_ref, bhn0_ref,
               wi1_ref, wh1_ref, bi1_ref, bhn1_ref,
               out_ref, gi0_ref):
    T, Nt, F = x_ref.shape
    H = wh0_ref.shape[0]
    G = 3 * H
    wdt = wh0_ref.dtype                       # matmul operand dtype (f32 or bf16)

    # Hoisted layer-0 input projection: one well-shaped (T*Nt, F)@(F, 3H) matmul,
    # stored in VMEM scratch, removing T tiny K=F matmuls from the serial chain.
    x2d = x_ref[...].reshape(T * Nt, F).astype(wdt)
    gi0_all = jnp.dot(x2d, wi0_ref[...], preferred_element_type=jnp.float32)
    gi0_ref[...] = (gi0_all + bi0_ref[...]).reshape(T, Nt, G)

    bhn0 = bhn0_ref[...]
    bhn1 = bhn1_ref[...]
    bi1 = bi1_ref[...]

    def gates(gi, gh, h, bhn):
        # gi already contains the folded biases.
        r = jax.nn.sigmoid(gi[:, :H] + gh[:, :H])
        z = jax.nn.sigmoid(gi[:, H:2 * H] + gh[:, H:2 * H])
        n = jnp.tanh(gi[:, 2 * H:] + r * (gh[:, 2 * H:] + bhn))
        return (1.0 - z) * n + z * h

    def body(t, carry):
        h0, h1 = carry
        # layer 0: only the hidden-path matmul remains in the recurrence
        gh0 = jnp.dot(h0.astype(wdt), wh0_ref[...],
                      preferred_element_type=jnp.float32)
        h0 = gates(gi0_ref[t], gh0, h0, bhn0)
        # layer 1
        gi1 = jnp.dot(h0.astype(wdt), wi1_ref[...],
                      preferred_element_type=jnp.float32) + bi1
        gh1 = jnp.dot(h1.astype(wdt), wh1_ref[...],
                      preferred_element_type=jnp.float32)
        h1 = gates(gi1, gh1, h1, bhn1)
        return (h0, h1)

    h0 = jnp.zeros((Nt, H), jnp.float32)
    h1 = jnp.zeros((Nt, H), jnp.float32)
    _, h1 = lax.fori_loop(0, T, body, (h0, h1), unroll=True)
    out_ref[...] = h1


# ---------------------------------------------------------------------------
# Kernel 2: bn1 -> cal_attention -> attention@h -> fc -> bn2 -> leaky_relu ->
#           fc_out.  Attention re-associated to an HxH Gram (no NxN buffers):
#   att @ hn = hn @ (hn^T hn)/H  -  rowmean * (rowmean^T hn)
# ---------------------------------------------------------------------------
def head_kernel(h_ref, g1_ref, b1_ref, wfc_ref, bfc_ref, g2_ref, b2_ref,
                wout_ref, bout_ref, out_ref):
    h = h_ref[...]                                                # (N, H)
    N, H = h.shape
    wdt = wfc_ref.dtype

    # BatchNorm1d with batch statistics (biased variance), affine
    mu = jnp.mean(h, axis=0, keepdims=True)
    var = jnp.mean((h - mu) ** 2, axis=0, keepdims=True)
    hn = (h - mu) * lax.rsqrt(var + EPS) * g1_ref[...] + b1_ref[...]

    # attention @ hn, without materializing the NxN attention matrix
    rm = jnp.mean(hn, axis=1, keepdims=True)                      # (N, 1)
    hnc = hn.astype(wdt)
    gram = lax.dot_general(hnc, hnc, (((0,), (0,)), ((), ())),
                           preferred_element_type=jnp.float32)    # (H, H)
    v = jnp.sum(hn * rm, axis=0, keepdims=True)                   # (1, H) = rm^T hn
    o = (jnp.dot(hnc, gram.astype(wdt), preferred_element_type=jnp.float32)
         * (1.0 / H)) - rm * v                                    # (N, H)

    # fc
    o = jnp.dot(o.astype(wdt), wfc_ref[...],
                preferred_element_type=jnp.float32) + bfc_ref[...]

    # bn2
    mu2 = jnp.mean(o, axis=0, keepdims=True)
    var2 = jnp.mean((o - mu2) ** 2, axis=0, keepdims=True)
    o = (o - mu2) * lax.rsqrt(var2 + EPS) * g2_ref[...] + b2_ref[...]

    # LeakyReLU
    o = jnp.where(o >= 0, o, LEAKY_SLOPE * o)

    # fc_out -> (N, 1)
    out_ref[...] = jnp.dot(o.astype(wdt), wout_ref[...],
                           preferred_element_type=jnp.float32) + bout_ref[...]


# ---------------------------------------------------------------------------
# Wrapper: layout, padding, BlockSpecs, pallas_call setup.
# ---------------------------------------------------------------------------
def hats_forward(x, p, d_feat, hidden_size, *, tile_n=None):
    N = x.shape[0]
    H = hidden_size
    F = d_feat
    T = x.shape[1] // d_feat

    # Batch tiling for the GRU (tile_n must be a multiple of 8 sublanes).
    if tile_n is None:
        tile_n = min(256, _round_up(N, 8))
    tile_n = max(8, _round_up(tile_n, 8))
    N_pad = _round_up(N, tile_n)

    x_p = jnp.pad(x, ((0, N_pad - N), (0, 0))) if N_pad != N else x
    # Single transpose to time-major: (N, F, T) -> (T, N, F)
    xs = jnp.transpose(x_p.reshape(N_pad, F, T), (2, 0, 1))

    def full_spec(a):
        return pl.BlockSpec(a.shape, lambda i, _nd=a.ndim: (0,) * _nd)

    gru_in = (xs, p["wi0"], p["wh0"], p["bi0"], p["bhn0"],
              p["wi1"], p["wh1"], p["bi1"], p["bhn1"])

    hidden = pl.pallas_call(
        gru_kernel,
        out_shape=jax.ShapeDtypeStruct((N_pad, H), jnp.float32),
        grid_spec=pltpu.PrefetchScalarGridSpec(
            num_scalar_prefetch=0,
            grid=(N_pad // tile_n,),
            in_specs=[pl.BlockSpec((T, tile_n, F), lambda i: (0, i, 0))]
                     + [full_spec(a) for a in gru_in[1:]],
            out_specs=pl.BlockSpec((tile_n, H), lambda i: (i, 0)),
            scratch_shapes=[pltpu.VMEM((T, tile_n, 3 * H), jnp.float32)],
        ),
        compiler_params=pltpu.CompilerParams(
            dimension_semantics=("parallel",)),
    )(*gru_in)

    if N_pad != N:
        hidden = hidden[:N]

    # Head: full-batch BatchNorm statistics require all N rows at once; with the
    # HxH Gram re-association the whole head is O(N*H) VMEM, so a single
    # grid-less call is fine even for thousands of stocks.
    # TODO(synk): fuse head into the GRU call when the grid collapses to 1 tile.
    vmem = pl.BlockSpec(memory_space=pltpu.MemorySpace.VMEM)
    head_in = (hidden, p["g1"], p["b1"], p["wfc"], p["bfc"],
               p["g2"], p["b2"], p["wout"], p["bout"])
    y = pl.pallas_call(
        head_kernel,
        out_shape=jax.ShapeDtypeStruct((N, 1), jnp.float32),
        in_specs=[vmem] * len(head_in),
        out_specs=vmem,
    )(*head_in)

    return y.reshape(N)   # .squeeze()


# ---------------------------------------------------------------------------
# Parameters: raw PyTorch-layout init + packing into the kernel layout.
# ---------------------------------------------------------------------------
def init_raw_params(key, d_feat, H):
    keys = jax.random.split(key, 12)
    s = 1.0 / np.sqrt(H)

    def u(k, shape):
        return jax.random.uniform(k, shape, jnp.float32, -s, s)

    return {
        # GRU layer 0 / 1, PyTorch layout: weight (3H, in), bias (3H,), gates [r,z,n]
        "w_ih_l0": u(keys[0], (3 * H, d_feat)), "w_hh_l0": u(keys[1], (3 * H, H)),
        "b_ih_l0": u(keys[2], (3 * H,)),        "b_hh_l0": u(keys[3], (3 * H,)),
        "w_ih_l1": u(keys[4], (3 * H, H)),      "w_hh_l1": u(keys[5], (3 * H, H)),
        "b_ih_l1": u(keys[6], (3 * H,)),        "b_hh_l1": u(keys[7], (3 * H,)),
        # bn1 / bn2 affine (PyTorch defaults weight=1, bias=0)
        "bn1_w": jnp.ones((H,), jnp.float32), "bn1_b": jnp.zeros((H,), jnp.float32),
        "bn2_w": jnp.ones((H,), jnp.float32), "bn2_b": jnp.zeros((H,), jnp.float32),
        # fc: Linear(H, H); fc_out: Linear(H, 1)
        "fc_w": u(keys[8], (H, H)), "fc_b": u(keys[9], (H,)),
        "fc_out_w": u(keys[10], (1, H)), "fc_out_b": u(keys[11], (1,)),
    }


def pack_params(raw, H, compute_dtype=jnp.float32):
    """Pack raw PyTorch-layout params into the kernel layout.

    compute_dtype controls the dtype of the MXU matmul operands (weights); use
    jnp.bfloat16 on v6e/v7x for full-rate MXU, keep jnp.float32 for exact parity.
    Biases / BN params stay float32.
    """
    def pack_gru(wi, wh, bi, bh):
        b_fold = jnp.concatenate(
            [bi[:H] + bh[:H], bi[H:2 * H] + bh[H:2 * H], bi[2 * H:]])
        return (jnp.transpose(wi).astype(compute_dtype),    # (in, 3H)
                jnp.transpose(wh).astype(compute_dtype),    # (H, 3H)
                b_fold.reshape(1, 3 * H),                    # (1, 3H)
                bh[2 * H:].reshape(1, H))                    # (1, H)  bh_n

    wi0, wh0, bi0, bhn0 = pack_gru(raw["w_ih_l0"], raw["w_hh_l0"],
                                   raw["b_ih_l0"], raw["b_hh_l0"])
    wi1, wh1, bi1, bhn1 = pack_gru(raw["w_ih_l1"], raw["w_hh_l1"],
                                   raw["b_ih_l1"], raw["b_hh_l1"])
    return {
        "wi0": wi0, "wh0": wh0, "bi0": bi0, "bhn0": bhn0,
        "wi1": wi1, "wh1": wh1, "bi1": bi1, "bhn1": bhn1,
        "g1": raw["bn1_w"].reshape(1, H), "b1": raw["bn1_b"].reshape(1, H),
        "wfc": jnp.transpose(raw["fc_w"]).astype(compute_dtype),
        "bfc": raw["fc_b"].reshape(1, H),
        "g2": raw["bn2_w"].reshape(1, H), "b2": raw["bn2_b"].reshape(1, H),
        "wout": jnp.transpose(raw["fc_out_w"]).astype(compute_dtype),   # (H, 1)
        "bout": raw["fc_out_b"].reshape(1, 1),
    }


# ---------------------------------------------------------------------------
# Pure-JAX reference (raw PyTorch layout, exact torch math) for correctness.
# ---------------------------------------------------------------------------
def ref_forward(x, r, d_feat, H):
    N = x.shape[0]
    xs = jnp.transpose(x.reshape(N, d_feat, -1), (0, 2, 1))   # (N, T, F)
    T = xs.shape[1]

    def cell(xt, h, wi, wh, bi, bh):
        gi = xt @ wi.T + bi
        gh = h @ wh.T + bh
        rr = jax.nn.sigmoid(gi[:, :H] + gh[:, :H])
        z = jax.nn.sigmoid(gi[:, H:2 * H] + gh[:, H:2 * H])
        n = jnp.tanh(gi[:, 2 * H:] + rr * gh[:, 2 * H:])
        return (1.0 - z) * n + z * h

    h0 = jnp.zeros((N, H), jnp.float32)
    h1 = jnp.zeros((N, H), jnp.float32)
    for t in range(T):
        h0 = cell(xs[:, t, :], h0, r["w_ih_l0"], r["w_hh_l0"], r["b_ih_l0"], r["b_hh_l0"])
        h1 = cell(h0, h1, r["w_ih_l1"], r["w_hh_l1"], r["b_ih_l1"], r["b_hh_l1"])

    def bn(v, g, b):
        mu = jnp.mean(v, axis=0, keepdims=True)
        var = jnp.mean((v - mu) ** 2, axis=0, keepdims=True)
        return (v - mu) / jnp.sqrt(var + EPS) * g + b

    hn = bn(h1, r["bn1_w"], r["bn1_b"])
    rm = jnp.mean(hn, axis=1, keepdims=True)
    att = (hn @ hn.T) / H - rm @ rm.T          # exact cal_attention
    o = att @ hn
    o = o @ r["fc_w"].T + r["fc_b"]
    o = bn(o, r["bn2_w"], r["bn2_b"])
    o = jnp.where(o >= 0, o, LEAKY_SLOPE * o)
    y = o @ r["fc_out_w"].T + r["fc_out_b"]
    return y.reshape(N)


if __name__ == "__main__":
    N, d_feat, T, H = 8, 6, 8, 32
    key = jax.random.PRNGKey(0)
    k_x, k_p = jax.random.split(key)
    x = jax.random.normal(k_x, (N, d_feat * T), jnp.float32)
    raw = init_raw_params(k_p, d_feat, H)

    # f32 matmul operands: exact-parity path, checked against the reference.
    params_f32 = pack_params(raw, H, jnp.float32)
    y = jax.block_until_ready(hats_forward(x, params_f32, d_feat, H))
    y_ref = ref_forward(x, raw, d_feat, H)
    np.testing.assert_allclose(np.asarray(y), np.asarray(y_ref), rtol=2e-2, atol=2e-2)

    # bf16 MXU-operand path (v6e/v7x production setting): run + sanity check.
    params_bf16 = pack_params(raw, H, jnp.bfloat16)
    y16 = jax.block_until_ready(hats_forward(x, params_bf16, d_feat, H))
    assert y16.shape == (N,) and bool(jnp.all(jnp.isfinite(y16)))

    print("KERNEL_OK")
</pallas_src>

<mosaic_0001>
module attributes {stable_mosaic.version = 11 : i64} {
  func.func @gru_kernel(%arg0: i32, %arg1: memref<8x8x6xf32, #tpu.memory_space<vmem>>, %arg2: memref<6x96xf32, #tpu.memory_space<vmem>>, %arg3: memref<32x96xf32, #tpu.memory_space<vmem>>, %arg4: memref<1x96xf32, #tpu.memory_space<vmem>>, %arg5: memref<1x32xf32, #tpu.memory_space<vmem>>, %arg6: memref<32x96xf32, #tpu.memory_space<vmem>>, %arg7: memref<32x96xf32, #tpu.memory_space<vmem>>, %arg8: memref<1x96xf32, #tpu.memory_space<vmem>>, %arg9: memref<1x32xf32, #tpu.memory_space<vmem>>, %arg10: memref<8x32xf32, #tpu.memory_space<vmem>>, %arg11: memref<8x8x96xf32, #tpu.memory_space<vmem>>) attributes {dimension_semantics = [#tpu.dimension_semantics<parallel>], iteration_bounds = array<i64: 1>, scalar_prefetch = 0 : i64, scratch_operands = 1 : i64, tpu.core_type = #tpu.core_type<tc>, window_params = [{transform_indices = @transform_0, window_bounds = array<i64: 8, 8, 6>}, {pipeline_mode = #tpu.pipeline_mode<synchronous>, transform_indices = @transform_1, window_bounds = array<i64: 6, 96>}, {pipeline_mode = #tpu.pipeline_mode<synchronous>, transform_indices = @transform_2, window_bounds = array<i64: 32, 96>}, {pipeline_mode = #tpu.pipeline_mode<synchronous>, transform_indices = @transform_3, window_bounds = array<i64: 1, 96>}, {pipeline_mode = #tpu.pipeline_mode<synchronous>, transform_indices = @transform_4, window_bounds = array<i64: 1, 32>}, {pipeline_mode = #tpu.pipeline_mode<synchronous>, transform_indices = @transform_5, window_bounds = array<i64: 32, 96>}, {pipeline_mode = #tpu.pipeline_mode<synchronous>, transform_indices = @transform_6, window_bounds = array<i64: 32, 96>}, {pipeline_mode = #tpu.pipeline_mode<synchronous>, transform_indices = @transform_7, window_bounds = array<i64: 1, 96>}, {pipeline_mode = #tpu.pipeline_mode<synchronous>, transform_indices = @transform_8, window_bounds = array<i64: 1, 32>}, {transform_indices = @transform_9, window_bounds = array<i64: 8, 32>}]} {
    %c0 = arith.constant 0 : index
    %c0_0 = arith.constant 0 : index
    %c0_1 = arith.constant 0 : index
    %0 = vector.load %arg1[%c0, %c0_0, %c0_1] : memref<8x8x6xf32, #tpu.memory_space<vmem>>, vector<8x8x6xf32>
    %1 = vector.shape_cast %0 : vector<8x8x6xf32> to vector<64x6xf32>
    %c0_2 = arith.constant 0 : index
    %c0_3 = arith.constant 0 : index
    %2 = vector.load %arg2[%c0_2, %c0_3] : memref<6x96xf32, #tpu.memory_space<vmem>>, vector<6x96xf32>
    %cst = arith.constant dense<0.000000e+00> : vector<64x96xf32>
    %3 = tpu.matmul %1, %2, %cst {dimension_numbers = #tpu.dot_dimension_numbers<[1], [0], [0], [1], [0, 0, 1, 1], [], []>} : vector<64x6xf32>, vector<6x96xf32>, vector<64x96xf32> -> vector<64x96xf32>
    %c0_4 = arith.constant 0 : index
    %c0_5 = arith.constant 0 : index
    %4 = vector.load %arg4[%c0_4, %c0_5] : memref<1x96xf32, #tpu.memory_space<vmem>>, vector<1x96xf32>
    %5 = vector.broadcast %4 : vector<1x96xf32> to vector<64x96xf32>
    %6 = arith.addf %3, %5 : vector<64x96xf32>
    %7 = vector.shape_cast %6 : vector<64x96xf32> to vector<8x8x96xf32>
    %c0_6 = arith.constant 0 : index
    %c0_7 = arith.constant 0 : index
    %c0_8 = arith.constant 0 : index
    %8 = vector.load %arg11[%c0_6, %c0_7, %c0_8] : memref<8x8x96xf32, #tpu.memory_space<vmem>>, vector<8x8x96xf32>
    tpu.vector_store %arg11[%c0_6, %c0_7, %c0_8], %7 {strides = array<i32>} : memref<8x8x96xf32, #tpu.memory_space<vmem>>, vector<8x8x96xf32>,
    %c0_9 = arith.constant 0 : index
    %c0_10 = arith.constant 0 : index
    %9 = vector.load %arg5[%c0_9, %c0_10] : memref<1x32xf32, #tpu.memory_space<vmem>>, vector<1x32xf32>
    %c0_11 = arith.constant 0 : index
    %c0_12 = arith.constant 0 : index
    %10 = vector.load %arg9[%c0_11, %c0_12] : memref<1x32xf32, #tpu.memory_space<vmem>>, vector<1x32xf32>
    %c0_13 = arith.constant 0 : index
    %c0_14 = arith.constant 0 : index
    %11 = vector.load %arg8[%c0_13, %c0_14] : memref<1x96xf32, #tpu.memory_space<vmem>>, vector<1x96xf32>
    %cst_15 = arith.constant 0.000000e+00 : f32
    %12 = vector.broadcast %cst_15 : f32 to vector<8x32xf32>
    %cst_16 = arith.constant 0.000000e+00 : f32
    %13 = vector.broadcast %cst_16 : f32 to vector<8x32xf32>
    %c0_i32 = arith.constant 0 : i32
    %c0_17 = arith.constant 0 : index
    %c0_18 = arith.constant 0 : index
    %14 = vector.load %arg3[%c0_17, %c0_18] : memref<32x96xf32, #tpu.memory_space<vmem>>, vector<32x96xf32>
    %cst_19 = arith.constant dense<0.000000e+00> : vector<8x96xf32>
    %15 = tpu.matmul %12, %14, %cst_19 {dimension_numbers = #tpu.dot_dimension_numbers<[1], [0], [0], [1], [0, 0, 1, 1], [], []>} : vector<8x32xf32>, vector<32x96xf32>, vector<8x96xf32> -> vector<8x96xf32>
    %16 = arith.index_cast %c0_i32 : i32 to index
    %c0_20 = arith.constant 0 : index
    %c0_21 = arith.constant 0 : index
    %17 = vector.load %arg11[%16, %c0_20, %c0_21] : memref<8x8x96xf32, #tpu.memory_space<vmem>>, vector<1x8x96xf32>
    %18 = vector.shape_cast %17 : vector<1x8x96xf32> to vector<8x96xf32>
    %19 = vector.extract_strided_slice %18 {offsets = [0, 0], sizes = [8, 32], strides = [1, 1]} : vector<8x96xf32> to vector<8x32xf32>
    %20 = vector.extract_strided_slice %15 {offsets = [0, 0], sizes = [8, 32], strides = [1, 1]} : vector<8x96xf32> to vector<8x32xf32>
    %21 = arith.addf %19, %20 : vector<8x32xf32>
    %22 = arith.negf %21 : vector<8x32xf32>
    %23 = math.exp %22 : vector<8x32xf32>
    %cst_22 = arith.constant 1.000000e+00 : f32
    %24 = vector.broadcast %cst_22 : f32 to vector<8x32xf32>
    %25 = arith.addf %24, %23 : vector<8x32xf32>
    %26 = arith.divf %24, %25 : vector<8x32xf32>
    %27 = vector.extract_strided_slice %18 {offsets = [0, 32], sizes = [8, 32], strides = [1, 1]} : vector<8x96xf32> to vector<8x32xf32>
    %28 = vector.extract_strided_slice %15 {offsets = [0, 32], sizes = [8, 32], strides = [1, 1]} : vector<8x96xf32> to vector<8x32xf32>
    %29 = arith.addf %27, %28 : vector<8x32xf32>
    %30 = arith.negf %29 : vector<8x32xf32>
    %31 = math.exp %30 : vector<8x32xf32>
    %cst_23 = arith.constant 1.000000e+00 : f32
    %32 = vector.broadcast %cst_23 : f32 to vector<8x32xf32>
    %33 = arith.addf %32, %31 : vector<8x32xf32>
    %34 = arith.divf %32, %33 : vector<8x32xf32>
    %35 = vector.extract_strided_slice %18 {offsets = [0, 64], sizes = [8, 32], strides = [1, 1]} : vector<8x96xf32> to vector<8x32xf32>
    %36 = vector.extract_strided_slice %15 {offsets = [0, 64], sizes = [8, 32], strides = [1, 1]} : vector<8x96xf32> to vector<8x32xf32>
    %37 = vector.broadcast %9 : vector<1x32xf32> to vector<8x32xf32>
    %38 = arith.addf %36, %37 : vector<8x32xf32>
    %39 = arith.mulf %26, %38 : vector<8x32xf32>
    %40 = arith.addf %35, %39 : vector<8x32xf32>
    %41 = math.tanh %40 : vector<8x32xf32>
    %cst_24 = arith.constant 1.000000e+00 : f32
    %42 = vector.broadcast %cst_24 : f32 to vector<8x32xf32>
    %43 = arith.subf %42, %34 : vector<8x32xf32>
    %44 = arith.mulf %43, %41 : vector<8x32xf32>
    %45 = arith.mulf %34, %12 : vector<8x32xf32>
    %46 = arith.addf %44, %45 : vector<8x32xf32>
    %c0_25 = arith.constant 0 : index
    %c0_26 = arith.constant 0 : index
    %47 = vector.load %arg6[%c0_25, %c0_26] : memref<32x96xf32, #tpu.memory_space<vmem>>, vector<32x96xf32>
    %cst_27 = arith.constant dense<0.000000e+00> : vector<8x96xf32>
    %48 = tpu.matmul %46, %47, %cst_27 {dimension_numbers = #tpu.dot_dimension_numbers<[1], [0], [0], [1], [0, 0, 1, 1], [], []>} : vector<8x32xf32>, vector<32x96xf32>, vector<8x96xf32> -> vector<8x96xf32>
    %49 = vector.broadcast %11 : vector<1x96xf32> to vector<8x96xf32>
    %50 = arith.addf %48, %49 : vector<8x96xf32>
    %c0_28 = arith.constant 0 : index
    %c0_29 = arith.constant 0 : index
    %51 = vector.load %arg7[%c0_28, %c0_29] : memref<32x96xf32, #tpu.memory_space<vmem>>, vector<32x96xf32>
    %cst_30 = arith.constant dense<0.000000e+00> : vector<8x96xf32>
    %52 = tpu.matmul %13, %51, %cst_30 {dimension_numbers = #tpu.dot_dimension_numbers<[1], [0], [0], [1], [0, 0, 1, 1], [], []>} : vector<8x32xf32>, vector<32x96xf32>, vector<8x96xf32> -> vector<8x96xf32>
    %53 = vector.extract_strided_slice %50 {offsets = [0, 0], sizes = [8, 32], strides = [1, 1]} : vector<8x96xf32> to vector<8x32xf32>
    %54 = vector.extract_strided_slice %52 {offsets = [0, 0], sizes = [8, 32], strides = [1, 1]} : vector<8x96xf32> to vector<8x32xf32>
    %55 = arith.addf %53, %54 : vector<8x32xf32>
    %56 = arith.negf %55 : vector<8x32xf32>
    %57 = math.exp %56 : vector<8x32xf32>
    %cst_31 = arith.constant 1.000000e+00 : f32
    %58 = vector.broadcast %cst_31 : f32 to vector<8x32xf32>
    %59 = arith.addf %58, %57 : vector<8x32xf32>
    %60 = arith.divf %58, %59 : vector<8x32xf32>
    %61 = vector.extract_strided_slice %50 {offsets = [0, 32], sizes = [8, 32], strides = [1, 1]} : vector<8x96xf32> to vector<8x32xf32>
    %62 = vector.extract_strided_slice %52 {offsets = [0, 32], sizes = [8, 32], strides = [1, 1]} : vector<8x96xf32> to vector<8x32xf32>
    %63 = arith.addf %61, %62 : vector<8x32xf32>
    %64 = arith.negf %63 : vector<8x32xf32>
    %65 = math.exp %64 : vector<8x32xf32>
    %cst_32 = arith.constant 1.000000e+00 : f32
    %66 = vector.broadcast %cst_32 : f32 to vector<8x32xf32>
    %67 = arith.addf %66, %65 : vector<8x32xf32>
    %68 = arith.divf %66, %67 : vector<8x32xf32>
    %69 = vector.extract_strided_slice %50 {offsets = [0, 64], sizes = [8, 32], strides = [1, 1]} : vector<8x96xf32> to vector<8x32xf32>
    %70 = vector.extract_strided_slice %52 {offsets = [0, 64], sizes = [8, 32], strides = [1, 1]} : vector<8x96xf32> to vector<8x32xf32>
    %71 = vector.broadcast %10 : vector<1x32xf32> to vector<8x32xf32>
    %72 = arith.addf %70, %71 : vector<8x32xf32>
    %73 = arith.mulf %60, %72 : vector<8x32xf32>
    %74 = arith.addf %69, %73 : vector<8x32xf32>
    %75 = math.tanh %74 : vector<8x32xf32>
    %cst_33 = arith.constant 1.000000e+00 : f32
    %76 = vector.broadcast %cst_33 : f32 to vector<8x32xf32>
    %77 = arith.subf %76, %68 : vector<8x32xf32>
    %78 = arith.mulf %77, %75 : vector<8x32xf32>
    %79 = arith.mulf %68, %13 : vector<8x32xf32>
    %80 = arith.addf %78, %79 : vector<8x32xf32>
    %c1_i32 = arith.constant 1 : i32
    %c0_34 = arith.constant 0 : index
    %c0_35 = arith.constant 0 : index
    %81 = vector.load %arg3[%c0_34, %c0_35] : memref<32x96xf32, #tpu.memory_space<vmem>>, vector<32x96xf32>
    %cst_36 = arith.constant dense<0.000000e+00> : vector<8x96xf32>
    %82 = tpu.matmul %46, %81, %cst_36 {dimension_numbers = #tpu.dot_dimension_numbers<[1], [0], [0], [1], [0, 0, 1, 1], [], []>} : vector<8x32xf32>, vector<32x96xf32>, vector<8x96xf32> -> vector<8x96xf32>
    %83 = arith.index_cast %c1_i32 : i32 to index
    %c0_37 = arith.constant 0 : index
    %c0_38 = arith.constant 0 : index
    %84 = vector.load %arg11[%83, %c0_37, %c0_38] : memref<8x8x96xf32, #tpu.memory_space<vmem>>, vector<1x8x96xf32>
    %85 = vector.shape_cast %84 : vector<1x8x96xf32> to vector<8x96xf32>
    %86 = vector.extract_strided_slice %85 {offsets = [0, 0], sizes = [8, 32], strides = [1, 1]} : vector<8x96xf32> to vector<8x32xf32>
    %87 = vector.extract_strided_slice %82 {offsets = [0, 0], sizes = [8, 32], strides = [1, 1]} : vector<8x96xf32> to vector<8x32xf32>
    %88 = arith.addf %86, %87 : vector<8x32xf32>
    %89 = arith.negf %88 : vector<8x32xf32>
    %90 = math.exp %89 : vector<8x32xf32>
    %cst_39 = arith.constant 1.000000e+00 : f32
    %91 = vector.broadcast %cst_39 : f32 to vector<8x32xf32>
    %92 = arith.addf %91, %90 : vector<8x32xf32>
    %93 = arith.divf %91, %92 : vector<8x32xf32>
    %94 = vector.extract_strided_slice %85 {offsets = [0, 32], sizes = [8, 32], strides = [1, 1]} : vector<8x96xf32> to vector<8x32xf32>
    %95 = vector.extract_strided_slice %82 {offsets = [0, 32], sizes = [8, 32], strides = [1, 1]} : vector<8x96xf32> to vector<8x32xf32>
    %96 = arith.addf %94, %95 : vector<8x32xf32>
    %97 = arith.negf %96 : vector<8x32xf32>
    %98 = math.exp %97 : vector<8x32xf32>
    %cst_40 = arith.constant 1.000000e+00 : f32
    %99 = vector.broadcast %cst_40 : f32 to vector<8x32xf32>
    %100 = arith.addf %99, %98 : vector<8x32xf32>
    %101 = arith.divf %99, %100 : vector<8x32xf32>
    %102 = vector.extract_strided_slice %85 {offsets = [0, 64], sizes = [8, 32], strides = [1, 1]} : vector<8x96xf32> to vector<8x32xf32>
    %103 = vector.extract_strided_slice %82 {offsets = [0, 64], sizes = [8, 32], strides = [1, 1]} : vector<8x96xf32> to vector<8x32xf32>
    %104 = vector.broadcast %9 : vector<1x32xf32> to vector<8x32xf32>
    %105 = arith.addf %103, %104 : vector<8x32xf32>
    %106 = arith.mulf %93, %105 : vector<8x32xf32>
    %107 = arith.addf %102, %106 : vector<8x32xf32>
    %108 = math.tanh %107 : vector<8x32xf32>
    %cst_41 = arith.constant 1.000000e+00 : f32
    %109 = vector.broadcast %cst_41 : f32 to vector<8x32xf32>
    %110 = arith.subf %109, %101 : vector<8x32xf32>
    %111 = arith.mulf %110, %108 : vector<8x32xf32>
    %112 = arith.mulf %101, %46 : vector<8x32xf32>
    %113 = arith.addf %111, %112 : vector<8x32xf32>
    %c0_42 = arith.constant 0 : index
    %c0_43 = arith.constant 0 : index
    %114 = vector.load %arg6[%c0_42, %c0_43] : memref<32x96xf32, #tpu.memory_space<vmem>>, vector<32x96xf32>
    %cst_44 = arith.constant dense<0.000000e+00> : vector<8x96xf32>
    %115 = tpu.matmul %113, %114, %cst_44 {dimension_numbers = #tpu.dot_dimension_numbers<[1], [0], [0], [1], [0, 0, 1, 1], [], []>} : vector<8x32xf32>, vector<32x96xf32>, vector<8x96xf32> -> vector<8x96xf32>
    %116 = vector.broadcast %11 : vector<1x96xf32> to vector<8x96xf32>
    %117 = arith.addf %115, %116 : vector<8x96xf32>
    %c0_45 = arith.constant 0 : index
    %c0_46 = arith.constant 0 : index
    %118 = vector.load %arg7[%c0_45, %c0_46] : memref<32x96xf32, #tpu.memory_space<vmem>>, vector<32x96xf32>
    %cst_47 = arith.constant dense<0.000000e+00> : vector<8x96xf32>
    %119 = tpu.matmul %80, %118, %cst_47 {dimension_numbers = #tpu.dot_dimension_numbers<[1], [0], [0], [1], [0, 0, 1, 1], [], []>} : vector<8x32xf32>, vector<32x96xf32>, vector<8x96xf32> -> vector<8x96xf32>
    %120 = vector.extract_strided_slice %117 {offsets = [0, 0], sizes = [8, 32], strides = [1, 1]} : vector<8x96xf32> to vector<8x32xf32>
    %121 = vector.extract_strided_slice %119 {offsets = [0, 0], sizes = [8, 32], strides = [1, 1]} : vector<8x96xf32> to vector<8x32xf32>
    %122 = arith.addf %120, %121 : vector<8x32xf32>
    %123 = arith.negf %122 : vector<8x32xf32>
    %124 = math.exp %123 : vector<8x32xf32>
    %cst_48 = arith.constant 1.000000e+00 : f32
    %125 = vector.broadcast %cst_48 : f32 to vector<8x32xf32>
    %126 = arith.addf %125, %124 : vector<8x32xf32>
    %127 = arith.divf %125, %126 : vector<8x32xf32>
    %128 = vector.extract_strided_slice %117 {offsets = [0, 32], sizes = [8, 32], strides = [1, 1]} : vector<8x96xf32> to vector<8x32xf32>
    %129 = vector.extract_strided_slice %119 {offsets = [0, 32], sizes = [8, 32], strides = [1, 1]} : vector<8x96xf32> to vector<8x32xf32>
    %130 = arith.addf %128, %129 : vector<8x32xf32>
    %131 = arith.negf %130 : vector<8x32xf32>
    %132 = math.exp %131 : vector<8x32xf32>
    %cst_49 = arith.constant 1.000000e+00 : f32
    %133 = vector.broadcast %cst_49 : f32 to vector<8x32xf32>
    %134 = arith.addf %133, %132 : vector<8x32xf32>
    %135 = arith.divf %133, %134 : vector<8x32xf32>
    %136 = vector.extract_strided_slice %117 {offsets = [0, 64], sizes = [8, 32], strides = [1, 1]} : vector<8x96xf32> to vector<8x32xf32>
    %137 = vector.extract_strided_slice %119 {offsets = [0, 64], sizes = [8, 32], strides = [1, 1]} : vector<8x96xf32> to vector<8x32xf32>
    %138 = vector.broadcast %10 : vector<1x32xf32> to vector<8x32xf32>
    %139 = arith.addf %137, %138 : vector<8x32xf32>
    %140 = arith.mulf %127, %139 : vector<8x32xf32>
    %141 = arith.addf %136, %140 : vector<8x32xf32>
    %142 = math.tanh %141 : vector<8x32xf32>
    %cst_50 = arith.constant 1.000000e+00 : f32
    %143 = vector.broadcast %cst_50 : f32 to vector<8x32xf32>
    %144 = arith.subf %143, %135 : vector<8x32xf32>
    %145 = arith.mulf %144, %142 : vector<8x32xf32>
    %146 = arith.mulf %135, %80 : vector<8x32xf32>
    %147 = arith.addf %145, %146 : vector<8x32xf32>
    %c2_i32 = arith.constant 2 : i32
    %c0_51 = arith.constant 0 : index
    %c0_52 = arith.constant 0 : index
    %148 = vector.load %arg3[%c0_51, %c0_52] : memref<32x96xf32, #tpu.memory_space<vmem>>, vector<32x96xf32>
    %cst_53 = arith.constant dense<0.000000e+00> : vector<8x96xf32>
    %149 = tpu.matmul %113, %148, %cst_53 {dimension_numbers = #tpu.dot_dimension_numbers<[1], [0], [0], [1], [0, 0, 1, 1], [], []>} : vector<8x32xf32>, vector<32x96xf32>, vector<8x96xf32> -> vector<8x96xf32>
    %150 = arith.index_cast %c2_i32 : i32 to index
    %c0_54 = arith.constant 0 : index
    %c0_55 = arith.constant 0 : index
    %151 = vector.load %arg11[%150, %c0_54, %c0_55] : memref<8x8x96xf32, #tpu.memory_space<vmem>>, vector<1x8x96xf32>
    %152 = vector.shape_cast %151 : vector<1x8x96xf32> to vector<8x96xf32>
    %153 = vector.extract_strided_slice %152 {offsets = [0, 0], sizes = [8, 32], strides = [1, 1]} : vector<8x96xf32> to vector<8x32xf32>
    %154 = vector.extract_strided_slice %149 {offsets = [0, 0], sizes = [8, 32], strides = [1, 1]} : vector<8x96xf32> to vector<8x32xf32>
    %155 = arith.addf %153, %154 : vector<8x32xf32>
    %156 = arith.negf %155 : vector<8x32xf32>
    %157 = math.exp %156 : vector<8x32xf32>
    %cst_56 = arith.constant 1.000000e+00 : f32
    %158 = vector.broadcast %cst_56 : f32 to vector<8x32xf32>
    %159 = arith.addf %158, %157 : vector<8x32xf32>
    %160 = arith.divf %158, %159 : vector<8x32xf32>
    %161 = vector.extract_strided_slice %152 {offsets = [0, 32], sizes = [8, 32], strides = [1, 1]} : vector<8x96xf32> to vector<8x32xf32>
    %162 = vector.extract_strided_slice %149 {offsets = [0, 32], sizes = [8, 32], strides = [1, 1]} : vector<8x96xf32> to vector<8x32xf32>
    %163 = arith.addf %161, %162 : vector<8x32xf32>
    %164 = arith.negf %163 : vector<8x32xf32>
    %165 = math.exp %164 : vector<8x32xf32>
    %cst_57 = arith.constant 1.000000e+00 : f32
    %166 = vector.broadcast %cst_57 : f32 to vector<8x32xf32>
    %167 = arith.addf %166, %165 : vector<8x32xf32>
    %168 = arith.divf %166, %167 : vector<8x32xf32>
    %169 = vector.extract_strided_slice %152 {offsets = [0, 64], sizes = [8, 32], strides = [1, 1]} : vector<8x96xf32> to vector<8x32xf32>
    %170 = vector.extract_strided_slice %149 {offsets = [0, 64], sizes = [8, 32], strides = [1, 1]} : vector<8x96xf32> to vector<8x32xf32>
    %171 = vector.broadcast %9 : vector<1x32xf32> to vector<8x32xf32>
    %172 = arith.addf %170, %171 : vector<8x32xf32>
    %173 = arith.mulf %160, %172 : vector<8x32xf32>
    %174 = arith.addf %169, %173 : vector<8x32xf32>
    %175 = math.tanh %174 : vector<8x32xf32>
    %cst_58 = arith.constant 1.000000e+00 : f32
    %176 = vector.broadcast %cst_58 : f32 to vector<8x32xf32>
    %177 = arith.subf %176, %168 : vector<8x32xf32>
    %178 = arith.mulf %177, %175 : vector<8x32xf32>
    %179 = arith.mulf %168, %113 : vector<8x32xf32>
    %180 = arith.addf %178, %179 : vector<8x32xf32>
    %c0_59 = arith.constant 0 : index
    %c0_60 = arith.constant 0 : index
    %181 = vector.load %arg6[%c0_59, %c0_60] : memref<32x96xf32, #tpu.memory_space<vmem>>, vector<32x96xf32>
    %cst_61 = arith.constant dense<0.000000e+00> : vector<8x96xf32>
    %182 = tpu.matmul %180, %181, %cst_61 {dimension_numbers = #tpu.dot_dimension_numbers<[1], [0], [0], [1], [0, 0, 1, 1], [], []>} : vector<8x32xf32>, vector<32x96xf32>, vector<8x96xf32> -> vector<8x96xf32>
    %183 = vector.broadcast %11 : vector<1x96xf32> to vector<8x96xf32>
    %184 = arith.addf %182, %183 : vector<8x96xf32>
    %c0_62 = arith.constant 0 : index
    %c0_63 = arith.constant 0 : index
    %185 = vector.load %arg7[%c0_62, %c0_63] : memref<32x96xf32, #tpu.memory_space<vmem>>, vector<32x96xf32>
    %cst_64 = arith.constant dense<0.000000e+00> : vector<8x96xf32>
    %186 = tpu.matmul %147, %185, %cst_64 {dimension_numbers = #tpu.dot_dimension_numbers<[1], [0], [0], [1], [0, 0, 1, 1], [], []>} : vector<8x32xf32>, vector<32x96xf32>, vector<8x96xf32> -> vector<8x96xf32>
    %187 = vector.extract_strided_slice %184 {offsets = [0, 0], sizes = [8, 32], strides = [1, 1]} : vector<8x96xf32> to vector<8x32xf32>
    %188 = vector.extract_strided_slice %186 {offsets = [0, 0], sizes = [8, 32], strides = [1, 1]} : vector<8x96xf32> to vector<8x32xf32>
    %189 = arith.addf %187, %188 : vector<8x32xf32>
    %190 = arith.negf %189 : vector<8x32xf32>
    %191 = math.exp %190 : vector<8x32xf32>
    %cst_65 = arith.constant 1.000000e+00 : f32
    %192 = vector.broadcast %cst_65 : f32 to vector<8x32xf32>
    %193 = arith.addf %192, %191 : vector<8x32xf32>
    %194 = arith.divf %192, %193 : vector<8x32xf32>
    %195 = vector.extract_strided_slice %184 {offsets = [0, 32], sizes = [8, 32], strides = [1, 1]} : vector<8x96xf32> to vector<8x32xf32>
    %196 = vector.extract_strided_slice %186 {offsets = [0, 32], sizes = [8, 32], strides = [1, 1]} : vector<8x96xf32> to vector<8x32xf32>
    %197 = arith.addf %195, %196 : vector<8x32xf32>
    %198 = arith.negf %197 : vector<8x32xf32>
    %199 = math.exp %198 : vector<8x32xf32>
    %cst_66 = arith.constant 1.000000e+00 : f32
    %200 = vector.broadcast %cst_66 : f32 to vector<8x32xf32>
    %201 = arith.addf %200, %199 : vector<8x32xf32>
    %202 = arith.divf %200, %201 : vector<8x32xf32>
    %203 = vector.extract_strided_slice %184 {offsets = [0, 64], sizes = [8, 32], strides = [1, 1]} : vector<8x96xf32> to vector<8x32xf32>
    %204 = vector.extract_strided_slice %186 {offsets = [0, 64], sizes = [8, 32], strides = [1, 1]} : vector<8x96xf32> to vector<8x32xf32>
    %205 = vector.broadcast %10 : vector<1x32xf32> to vector<8x32xf32>
    %206 = arith.addf %204, %205 : vector<8x32xf32>
    %207 = arith.mulf %194, %206 : vector<8x32xf32>
    %208 = arith.addf %203, %207 : vector<8x32xf32>
    %209 = math.tanh %208 : vector<8x32xf32>
    %cst_67 = arith.constant 1.000000e+00 : f32
    %210 = vector.broadcast %cst_67 : f32 to vector<8x32xf32>
    %211 = arith.subf %210, %202 : vector<8x32xf32>
    %212 = arith.mulf %211, %209 : vector<8x32xf32>
    %213 = arith.mulf %202, %147 : vector<8x32xf32>
    %214 = arith.addf %212, %213 : vector<8x32xf32>
    %c3_i32 = arith.constant 3 : i32
    %c0_68 = arith.constant 0 : index
    %c0_69 = arith.constant 0 : index
    %215 = vector.load %arg3[%c0_68, %c0_69] : memref<32x96xf32, #tpu.memory_space<vmem>>, vector<32x96xf32>
    %cst_70 = arith.constant dense<0.000000e+00> : vector<8x96xf32>
    %216 = tpu.matmul %180, %215, %cst_70 {dimension_numbers = #tpu.dot_dimension_numbers<[1], [0], [0], [1], [0, 0, 1, 1], [], []>} : vector<8x32xf32>, vector<32x96xf32>, vector<8x96xf32> -> vector<8x96xf32>
    %217 = arith.index_cast %c3_i32 : i32 to index
    %c0_71 = arith.constant 0 : index
    %c0_72 = arith.constant 0 : index
    %218 = vector.load %arg11[%217, %c0_71, %c0_72] : memref<8x8x96xf32, #tpu.memory_space<vmem>>, vector<1x8x96xf32>
    %219 = vector.shape_cast %218 : vector<1x8x96xf32> to vector<8x96xf32>
    %220 = vector.extract_strided_slice %219 {offsets = [0, 0], sizes = [8, 32], strides = [1, 1]} : vector<8x96xf32> to vector<8x32xf32>
    %221 = vector.extract_strided_slice %216 {offsets = [0, 0], sizes = [8, 32], strides = [1, 1]} : vector<8x96xf32> to vector<8x32xf32>
    %222 = arith.addf %220, %221 : vector<8x32xf32>
    %223 = arith.negf %222 : vector<8x32xf32>
    %224 = math.exp %223 : vector<8x32xf32>
    %cst_73 = arith.constant 1.000000e+00 : f32
    %225 = vector.broadcast %cst_73 : f32 to vector<8x32xf32>
    %226 = arith.addf %225, %224 : vector<8x32xf32>
    %227 = arith.divf %225, %226 : vector<8x32xf32>
    %228 = vector.extract_strided_slice %219 {offsets = [0, 32], sizes = [8, 32], strides = [1, 1]} : vector<8x96xf32> to vector<8x32xf32>
    %229 = vector.extract_strided_slice %216 {offsets = [0, 32], sizes = [8, 32], strides = [1, 1]} : vector<8x96xf32> to vector<8x32xf32>
    %230 = arith.addf %228, %229 : vector<8x32xf32>
    %231 = arith.negf %230 : vector<8x32xf32>
    %232 = math.exp %231 : vector<8x32xf32>
    %cst_74 = arith.constant 1.000000e+00 : f32
    %233 = vector.broadcast %cst_74 : f32 to vector<8x32xf32>
    %234 = arith.addf %233, %232 : vector<8x32xf32>
    %235 = arith.divf %233, %234 : vector<8x32xf32>
    %236 = vector.extract_strided_slice %219 {offsets = [0, 64], sizes = [8, 32], strides = [1, 1]} : vector<8x96xf32> to vector<8x32xf32>
    %237 = vector.extract_strided_slice %216 {offsets = [0, 64], sizes = [8, 32], strides = [1, 1]} : vector<8x96xf32> to vector<8x32xf32>
    %238 = vector.broadcast %9 : vector<1x32xf32> to vector<8x32xf32>
    %239 = arith.addf %237, %238 : vector<8x32xf32>
    %240 = arith.mulf %227, %239 : vector<8x32xf32>
    %241 = arith.addf %236, %240 : vector<8x32xf32>
    %242 = math.tanh %241 : vector<8x32xf32>
    %cst_75 = arith.constant 1.000000e+00 : f32
    %243 = vector.broadcast %cst_75 : f32 to vector<8x32xf32>
    %244 = arith.subf %243, %235 : vector<8x32xf32>
    %245 = arith.mulf %244, %242 : vector<8x32xf32>
    %246 = arith.mulf %235, %180 : vector<8x32xf32>
    %247 = arith.addf %245, %246 : vector<8x32xf32>
    %c0_76 = arith.constant 0 : index
    %c0_77 = arith.constant 0 : index
    %248 = vector.load %arg6[%c0_76, %c0_77] : memref<32x96xf32, #tpu.memory_space<vmem>>, vector<32x96xf32>
    %cst_78 = arith.constant dense<0.000000e+00> : vector<8x96xf32>
    %249 = tpu.matmul %247, %248, %cst_78 {dimension_numbers = #tpu.dot_dimension_numbers<[1], [0], [0], [1], [0, 0, 1, 1], [], []>} : vector<8x32xf32>, vector<32x96xf32>, vector<8x96xf32> -> vector<8x96xf32>
    %250 = vector.broadcast %11 : vector<1x96xf32> to vector<8x96xf32>
    %251 = arith.addf %249, %250 : vector<8x96xf32>
    %c0_79 = arith.constant 0 : index
    %c0_80 = arith.constant 0 : index
    %252 = vector.load %arg7[%c0_79, %c0_80] : memref<32x96xf32, #tpu.memory_space<vmem>>, vector<32x96xf32>
    %cst_81 = arith.constant dense<0.000000e+00> : vector<8x96xf32>
    %253 = tpu.matmul %214, %252, %cst_81 {dimension_numbers = #tpu.dot_dimension_numbers<[1], [0], [0], [1], [0, 0, 1, 1], [], []>} : vector<8x32xf32>, vector<32x96xf32>, vector<8x96xf32> -> vector<8x96xf32>
    %254 = vector.extract_strided_slice %251 {offsets = [0, 0], sizes = [8, 32], strides = [1, 1]} : vector<8x96xf32> to vector<8x32xf32>
    %255 = vector.extract_strided_slice %253 {offsets = [0, 0], sizes = [8, 32], strides = [1, 1]} : vector<8x96xf32> to vector<8x32xf32>
    %256 = arith.addf %254, %255 : vector<8x32xf32>
    %257 = arith.negf %256 : vector<8x32xf32>
    %258 = math.exp %257 : vector<8x32xf32>
    %cst_82 = arith.constant 1.000000e+00 : f32
    %259 = vector.broadcast %cst_82 : f32 to vector<8x32xf32>
    %260 = arith.addf %259, %258 : vector<8x32xf32>
    %261 = arith.divf %259, %260 : vector<8x32xf32>
    %262 = vector.extract_strided_slice %251 {offsets = [0, 32], sizes = [8, 32], strides = [1, 1]} : vector<8x96xf32> to vector<8x32xf32>
    %263 = vector.extract_strided_slice %253 {offsets = [0, 32], sizes = [8, 32], strides = [1, 1]} : vector<8x96xf32> to vector<8x32xf32>
    %264 = arith.addf %262, %263 : vector<8x32xf32>
    %265 = arith.negf %264 : vector<8x32xf32>
    %266 = math.exp %265 : vector<8x32xf32>
    %cst_83 = arith.constant 1.000000e+00 : f32
    %267 = vector.broadcast %cst_83 : f32 to vector<8x32xf32>
    %268 = arith.addf %267, %266 : vector<8x32xf32>
    %269 = arith.divf %267, %268 : vector<8x32xf32>
    %270 = vector.extract_strided_slice %251 {offsets = [0, 64], sizes = [8, 32], strides = [1, 1]} : vector<8x96xf32> to vector<8x32xf32>
    %271 = vector.extract_strided_slice %253 {offsets = [0, 64], sizes = [8, 32], strides = [1, 1]} : vector<8x96xf32> to vector<8x32xf32>
    %272 = vector.broadcast %10 : vector<1x32xf32> to vector<8x32xf32>
    %273 = arith.addf %271, %272 : vector<8x32xf32>
    %274 = arith.mulf %261, %273 : vector<8x32xf32>
    %275 = arith.addf %270, %274 : vector<8x32xf32>
    %276 = math.tanh %275 : vector<8x32xf32>
    %cst_84 = arith.constant 1.000000e+00 : f32
    %277 = vector.broadcast %cst_84 : f32 to vector<8x32xf32>
    %278 = arith.subf %277, %269 : vector<8x32xf32>
    %279 = arith.mulf %278, %276 : vector<8x32xf32>
    %280 = arith.mulf %269, %214 : vector<8x32xf32>
    %281 = arith.addf %279, %280 : vector<8x32xf32>
    %c4_i32 = arith.constant 4 : i32
    %c0_85 = arith.constant 0 : index
    %c0_86 = arith.constant 0 : index
    %282 = vector.load %arg3[%c0_85, %c0_86] : memref<32x96xf32, #tpu.memory_space<vmem>>, vector<32x96xf32>
    %cst_87 = arith.constant dense<0.000000e+00> : vector<8x96xf32>
    %283 = tpu.matmul %247, %282, %cst_87 {dimension_numbers = #tpu.dot_dimension_numbers<[1], [0], [0], [1], [0, 0, 1, 1], [], []>} : vector<8x32xf32>, vector<32x96xf32>, vector<8x96xf32> -> vector<8x96xf32>
    %284 = arith.index_cast %c4_i32 : i32 to index
    %c0_88 = arith.constant 0 : index
    %c0_89 = arith.constant 0 : index
    %285 = vector.load %arg11[%284, %c0_88, %c0_89] : memref<8x8x96xf32, #tpu.memory_space<vmem>>, vector<1x8x96xf32>
    %286 = vector.shape_cast %285 : vector<1x8x96xf32> to vector<8x96xf32>
    %287 = vector.extract_strided_slice %286 {offsets = [0, 0], sizes = [8, 32], strides = [1, 1]} : vector<8x96xf32> to vector<8x32xf32>
    %288 = vector.extract_strided_slice %283 {offsets = [0, 0], sizes = [8, 32], strides = [1, 1]} : vector<8x96xf32> to vector<8x32xf32>
    %289 = arith.addf %287, %288 : vector<8x32xf32>
    %290 = arith.negf %289 : vector<8x32xf32>
    %291 = math.exp %290 : vector<8x32xf32>
    %cst_90 = arith.constant 1.000000e+00 : f32
    %292 = vector.broadcast %cst_90 : f32 to vector<8x32xf32>
    %293 = arith.addf %292, %291 : vector<8x32xf32>
    %294 = arith.divf %292, %293 : vector<8x32xf32>
    %295 = vector.extract_strided_slice %286 {offsets = [0, 32], sizes = [8, 32], strides = [1, 1]} : vector<8x96xf32> to vector<8x32xf32>
    %296 = vector.extract_strided_slice %283 {offsets = [0, 32], sizes = [8, 32], strides = [1, 1]} : vector<8x96xf32> to vector<8x32xf32>
    %297 = arith.addf %295, %296 : vector<8x32xf32>
    %298 = arith.negf %297 : vector<8x32xf32>
    %299 = math.exp %298 : vector<8x32xf32>
    %cst_91 = arith.constant 1.000000e+00 : f32
    %300 = vector.broadcast %cst_91 : f32 to vector<8x32xf32>
    %301 = arith.addf %300, %299 : vector<8x32xf32>
    %302 = arith.divf %300, %301 : vector<8x32xf32>
    %303 = vector.extract_strided_slice %286 {offsets = [0, 64], sizes = [8, 32], strides = [1, 1]} : vector<8x96xf32> to vector<8x32xf32>
    %304 = vector.extract_strided_slice %283 {offsets = [0, 64], sizes = [8, 32], strides = [1, 1]} : vector<8x96xf32> to vector<8x32xf32>
    %305 = vector.broadcast %9 : vector<1x32xf32> to vector<8x32xf32>
    %306 = arith.addf %304, %305 : vector<8x32xf32>
    %307 = arith.mulf %294, %306 : vector<8x32xf32>
    %308 = arith.addf %303, %307 : vector<8x32xf32>
    %309 = math.tanh %308 : vector<8x32xf32>
    %cst_92 = arith.constant 1.000000e+00 : f32
    %310 = vector.broadcast %cst_92 : f32 to vector<8x32xf32>
    %311 = arith.subf %310, %302 : vector<8x32xf32>
    %312 = arith.mulf %311, %309 : vector<8x32xf32>
    %313 = arith.mulf %302, %247 : vector<8x32xf32>
    %314 = arith.addf %312, %313 : vector<8x32xf32>
    %c0_93 = arith.constant 0 : index
    %c0_94 = arith.constant 0 : index
    %315 = vector.load %arg6[%c0_93, %c0_94] : memref<32x96xf32, #tpu.memory_space<vmem>>, vector<32x96xf32>
    %cst_95 = arith.constant dense<0.000000e+00> : vector<8x96xf32>
    %316 = tpu.matmul %314, %315, %cst_95 {dimension_numbers = #tpu.dot_dimension_numbers<[1], [0], [0], [1], [0, 0, 1, 1], [], []>} : vector<8x32xf32>, vector<32x96xf32>, vector<8x96xf32> -> vector<8x96xf32>
    %317 = vector.broadcast %11 : vector<1x96xf32> to vector<8x96xf32>
    %318 = arith.addf %316, %317 : vector<8x96xf32>
    %c0_96 = arith.constant 0 : index
    %c0_97 = arith.constant 0 : index
    %319 = vector.load %arg7[%c0_96, %c0_97] : memref<32x96xf32, #tpu.memory_space<vmem>>, vector<32x96xf32>
    %cst_98 = arith.constant dense<0.000000e+00> : vector<8x96xf32>
    %320 = tpu.matmul %281, %319, %cst_98 {dimension_numbers = #tpu.dot_dimension_numbers<[1], [0], [0], [1], [0, 0, 1, 1], [], []>} : vector<8x32xf32>, vector<32x96xf32>, vector<8x96xf32> -> vector<8x96xf32>
    %321 = vector.extract_strided_slice %318 {offsets = [0, 0], sizes = [8, 32], strides = [1, 1]} : vector<8x96xf32> to vector<8x32xf32>
    %322 = vector.extract_strided_slice %320 {offsets = [0, 0], sizes = [8, 32], strides = [1, 1]} : vector<8x96xf32> to vector<8x32xf32>
    %323 = arith.addf %321, %322 : vector<8x32xf32>
    %324 = arith.negf %323 : vector<8x32xf32>
    %325 = math.exp %324 : vector<8x32xf32>
    %cst_99 = arith.constant 1.000000e+00 : f32
    %326 = vector.broadcast %cst_99 : f32 to vector<8x32xf32>
    %327 = arith.addf %326, %325 : vector<8x32xf32>
    %328 = arith.divf %326, %327 : vector<8x32xf32>
    %329 = vector.extract_strided_slice %318 {offsets = [0, 32], sizes = [8, 32], strides = [1, 1]} : vector<8x96xf32> to vector<8x32xf32>
    %330 = vector.extract_strided_slice %320 {offsets = [0, 32], sizes = [8, 32], strides = [1, 1]} : vector<8x96xf32> to vector<8x32xf32>
    %331 = arith.addf %329, %330 : vector<8x32xf32>
    %332 = arith.negf %331 : vector<8x32xf32>
    %333 = math.exp %332 : vector<8x32xf32>
    %cst_100 = arith.constant 1.000000e+00 : f32
    %334 = vector.broadcast %cst_100 : f32 to vector<8x32xf32>
    %335 = arith.addf %334, %333 : vector<8x32xf32>
    %336 = arith.divf %334, %335 : vector<8x32xf32>
    %337 = vector.extract_strided_slice %318 {offsets = [0, 64], sizes = [8, 32], strides = [1, 1]} : vector<8x96xf32> to vector<8x32xf32>
    %338 = vector.extract_strided_slice %320 {offsets = [0, 64], sizes = [8, 32], strides = [1, 1]} : vector<8x96xf32> to vector<8x32xf32>
    %339 = vector.broadcast %10 : vector<1x32xf32> to vector<8x32xf32>
    %340 = arith.addf %338, %339 : vector<8x32xf32>
    %341 = arith.mulf %328, %340 : vector<8x32xf32>
    %342 = arith.addf %337, %341 : vector<8x32xf32>
    %343 = math.tanh %342 : vector<8x32xf32>
    %cst_101 = arith.constant 1.000000e+00 : f32
    %344 = vector.broadcast %cst_101 : f32 to vector<8x32xf32>
    %345 = arith.subf %344, %336 : vector<8x32xf32>
    %346 = arith.mulf %345, %343 : vector<8x32xf32>
    %347 = arith.mulf %336, %281 : vector<8x32xf32>
    %348 = arith.addf %346, %347 : vector<8x32xf32>
    %c5_i32 = arith.constant 5 : i32
    %c0_102 = arith.constant 0 : index
    %c0_103 = arith.constant 0 : index
    %349 = vector.load %arg3[%c0_102, %c0_103] : memref<32x96xf32, #tpu.memory_space<vmem>>, vector<32x96xf32>
    %cst_104 = arith.constant dense<0.000000e+00> : vector<8x96xf32>
    %350 = tpu.matmul %314, %349, %cst_104 {dimension_numbers = #tpu.dot_dimension_numbers<[1], [0], [0], [1], [0, 0, 1, 1], [], []>} : vector<8x32xf32>, vector<32x96xf32>, vector<8x96xf32> -> vector<8x96xf32>
    %351 = arith.index_cast %c5_i32 : i32 to index
    %c0_105 = arith.constant 0 : index
    %c0_106 = arith.constant 0 : index
    %352 = vector.load %arg11[%351, %c0_105, %c0_106] : memref<8x8x96xf32, #tpu.memory_space<vmem>>, vector<1x8x96xf32>
    %353 = vector.shape_cast %352 : vector<1x8x96xf32> to vector<8x96xf32>
    %354 = vector.extract_strided_slice %353 {offsets = [0, 0], sizes = [8, 32], strides = [1, 1]} : vector<8x96xf32> to vector<8x32xf32>
    %355 = vector.extract_strided_slice %350 {offsets = [0, 0], sizes = [8, 32], strides = [1, 1]} : vector<8x96xf32> to vector<8x32xf32>
    %356 = arith.addf %354, %355 : vector<8x32xf32>
    %357 = arith.negf %356 : vector<8x32xf32>
    %358 = math.exp %357 : vector<8x32xf32>
    %cst_107 = arith.constant 1.000000e+00 : f32
    %359 = vector.broadcast %cst_107 : f32 to vector<8x32xf32>
    %360 = arith.addf %359, %358 : vector<8x32xf32>
    %361 = arith.divf %359, %360 : vector<8x32xf32>
    %362 = vector.extract_strided_slice %353 {offsets = [0, 32], sizes = [8, 32], strides = [1, 1]} : vector<8x96xf32> to vector<8x32xf32>
    %363 = vector.extract_strided_slice %350 {offsets = [0, 32], sizes = [8, 32], strides = [1, 1]} : vector<8x96xf32> to vector<8x32xf32>
    %364 = arith.addf %362, %363 : vector<8x32xf32>
    %365 = arith.negf %364 : vector<8x32xf32>
    %366 = math.exp %365 : vector<8x32xf32>
    %cst_108 = arith.constant 1.000000e+00 : f32
    %367 = vector.broadcast %cst_108 : f32 to vector<8x32xf32>
    %368 = arith.addf %367, %366 : vector<8x32xf32>
    %369 = arith.divf %367, %368 : vector<8x32xf32>
    %370 = vector.extract_strided_slice %353 {offsets = [0, 64], sizes = [8, 32], strides = [1, 1]} : vector<8x96xf32> to vector<8x32xf32>
    %371 = vector.extract_strided_slice %350 {offsets = [0, 64], sizes = [8, 32], strides = [1, 1]} : vector<8x96xf32> to vector<8x32xf32>
    %372 = vector.broadcast %9 : vector<1x32xf32> to vector<8x32xf32>
    %373 = arith.addf %371, %372 : vector<8x32xf32>
    %374 = arith.mulf %361, %373 : vector<8x32xf32>
    %375 = arith.addf %370, %374 : vector<8x32xf32>
    %376 = math.tanh %375 : vector<8x32xf32>
    %cst_109 = arith.constant 1.000000e+00 : f32
    %377 = vector.broadcast %cst_109 : f32 to vector<8x32xf32>
    %378 = arith.subf %377, %369 : vector<8x32xf32>
    %379 = arith.mulf %378, %376 : vector<8x32xf32>
    %380 = arith.mulf %369, %314 : vector<8x32xf32>
    %381 = arith.addf %379, %380 : vector<8x32xf32>
    %c0_110 = arith.constant 0 : index
    %c0_111 = arith.constant 0 : index
    %382 = vector.load %arg6[%c0_110, %c0_111] : memref<32x96xf32, #tpu.memory_space<vmem>>, vector<32x96xf32>
    %cst_112 = arith.constant dense<0.000000e+00> : vector<8x96xf32>
    %383 = tpu.matmul %381, %382, %cst_112 {dimension_numbers = #tpu.dot_dimension_numbers<[1], [0], [0], [1], [0, 0, 1, 1], [], []>} : vector<8x32xf32>, vector<32x96xf32>, vector<8x96xf32> -> vector<8x96xf32>
    %384 = vector.broadcast %11 : vector<1x96xf32> to vector<8x96xf32>
    %385 = arith.addf %383, %384 : vector<8x96xf32>
    %c0_113 = arith.constant 0 : index
    %c0_114 = arith.constant 0 : index
    %386 = vector.load %arg7[%c0_113, %c0_114] : memref<32x96xf32, #tpu.memory_space<vmem>>, vector<32x96xf32>
    %cst_115 = arith.constant dense<0.000000e+00> : vector<8x96xf32>
    %387 = tpu.matmul %348, %386, %cst_115 {dimension_numbers = #tpu.dot_dimension_numbers<[1], [0], [0], [1], [0, 0, 1, 1], [], []>} : vector<8x32xf32>, vector<32x96xf32>, vector<8x96xf32> -> vector<8x96xf32>
    %388 = vector.extract_strided_slice %385 {offsets = [0, 0], sizes = [8, 32], strides = [1, 1]} : vector<8x96xf32> to vector<8x32xf32>
    %389 = vector.extract_strided_slice %387 {offsets = [0, 0], sizes = [8, 32], strides = [1, 1]} : vector<8x96xf32> to vector<8x32xf32>
    %390 = arith.addf %388, %389 : vector<8x32xf32>
    %391 = arith.negf %390 : vector<8x32xf32>
    %392 = math.exp %391 : vector<8x32xf32>
    %cst_116 = arith.constant 1.000000e+00 : f32
    %393 = vector.broadcast %cst_116 : f32 to vector<8x32xf32>
    %394 = arith.addf %393, %392 : vector<8x32xf32>
    %395 = arith.divf %393, %394 : vector<8x32xf32>
    %396 = vector.extract_strided_slice %385 {offsets = [0, 32], sizes = [8, 32], strides = [1, 1]} : vector<8x96xf32> to vector<8x32xf32>
    %397 = vector.extract_strided_slice %387 {offsets = [0, 32], sizes = [8, 32], strides = [1, 1]} : vector<8x96xf32> to vector<8x32xf32>
    %398 = arith.addf %396, %397 : vector<8x32xf32>
    %399 = arith.negf %398 : vector<8x32xf32>
    %400 = math.exp %399 : vector<8x32xf32>
    %cst_117 = arith.constant 1.000000e+00 : f32
    %401 = vector.broadcast %cst_117 : f32 to vector<8x32xf32>
    %402 = arith.addf %401, %400 : vector<8x32xf32>
    %403 = arith.divf %401, %402 : vector<8x32xf32>
    %404 = vector.extract_strided_slice %385 {offsets = [0, 64], sizes = [8, 32], strides = [1, 1]} : vector<8x96xf32> to vector<8x32xf32>
    %405 = vector.extract_strided_slice %387 {offsets = [0, 64], sizes = [8, 32], strides = [1, 1]} : vector<8x96xf32> to vector<8x32xf32>
    %406 = vector.broadcast %10 : vector<1x32xf32> to vector<8x32xf32>
    %407 = arith.addf %405, %406 : vector<8x32xf32>
    %408 = arith.mulf %395, %407 : vector<8x32xf32>
    %409 = arith.addf %404, %408 : vector<8x32xf32>
    %410 = math.tanh %409 : vector<8x32xf32>
    %cst_118 = arith.constant 1.000000e+00 : f32
    %411 = vector.broadcast %cst_118 : f32 to vector<8x32xf32>
    %412 = arith.subf %411, %403 : vector<8x32xf32>
    %413 = arith.mulf %412, %410 : vector<8x32xf32>
    %414 = arith.mulf %403, %348 : vector<8x32xf32>
    %415 = arith.addf %413, %414 : vector<8x32xf32>
    %c6_i32 = arith.constant 6 : i32
    %c0_119 = arith.constant 0 : index
    %c0_120 = arith.constant 0 : index
    %416 = vector.load %arg3[%c0_119, %c0_120] : memref<32x96xf32, #tpu.memory_space<vmem>>, vector<32x96xf32>
    %cst_121 = arith.constant dense<0.000000e+00> : vector<8x96xf32>
    %417 = tpu.matmul %381, %416, %cst_121 {dimension_numbers = #tpu.dot_dimension_numbers<[1], [0], [0], [1], [0, 0, 1, 1], [], []>} : vector<8x32xf32>, vector<32x96xf32>, vector<8x96xf32> -> vector<8x96xf32>
    %418 = arith.index_cast %c6_i32 : i32 to index
    %c0_122 = arith.constant 0 : index
    %c0_123 = arith.constant 0 : index
    %419 = vector.load %arg11[%418, %c0_122, %c0_123] : memref<8x8x96xf32, #tpu.memory_space<vmem>>, vector<1x8x96xf32>
    %420 = vector.shape_cast %419 : vector<1x8x96xf32> to vector<8x96xf32>
    %421 = vector.extract_strided_slice %420 {offsets = [0, 0], sizes = [8, 32], strides = [1, 1]} : vector<8x96xf32> to vector<8x32xf32>
    %422 = vector.extract_strided_slice %417 {offsets = [0, 0], sizes = [8, 32], strides = [1, 1]} : vector<8x96xf32> to vector<8x32xf32>
    %423 = arith.addf %421, %422 : vector<8x32xf32>
    %424 = arith.negf %423 : vector<8x32xf32>
    %425 = math.exp %424 : vector<8x32xf32>
    %cst_124 = arith.constant 1.000000e+00 : f32
    %426 = vector.broadcast %cst_124 : f32 to vector<8x32xf32>
    %427 = arith.addf %426, %425 : vector<8x32xf32>
    %428 = arith.divf %426, %427 : vector<8x32xf32>
    %429 = vector.extract_strided_slice %420 {offsets = [0, 32], sizes = [8, 32], strides = [1, 1]} : vector<8x96xf32> to vector<8x32xf32>
    %430 = vector.extract_strided_slice %417 {offsets = [0, 32], sizes = [8, 32], strides = [1, 1]} : vector<8x96xf32> to vector<8x32xf32>
    %431 = arith.addf %429, %430 : vector<8x32xf32>
    %432 = arith.negf %431 : vector<8x32xf32>
    %433 = math.exp %432 : vector<8x32xf32>
    %cst_125 = arith.constant 1.000000e+00 : f32
    %434 = vector.broadcast %cst_125 : f32 to vector<8x32xf32>
    %435 = arith.addf %434, %433 : vector<8x32xf32>
    %436 = arith.divf %434, %435 : vector<8x32xf32>
    %437 = vector.extract_strided_slice %420 {offsets = [0, 64], sizes = [8, 32], strides = [1, 1]} : vector<8x96xf32> to vector<8x32xf32>
    %438 = vector.extract_strided_slice %417 {offsets = [0, 64], sizes = [8, 32], strides = [1, 1]} : vector<8x96xf32> to vector<8x32xf32>
    %439 = vector.broadcast %9 : vector<1x32xf32> to vector<8x32xf32>
    %440 = arith.addf %438, %439 : vector<8x32xf32>
    %441 = arith.mulf %428, %440 : vector<8x32xf32>
    %442 = arith.addf %437, %441 : vector<8x32xf32>
    %443 = math.tanh %442 : vector<8x32xf32>
    %cst_126 = arith.constant 1.000000e+00 : f32
    %444 = vector.broadcast %cst_126 : f32 to vector<8x32xf32>
    %445 = arith.subf %444, %436 : vector<8x32xf32>
    %446 = arith.mulf %445, %443 : vector<8x32xf32>
    %447 = arith.mulf %436, %381 : vector<8x32xf32>
    %448 = arith.addf %446, %447 : vector<8x32xf32>
    %c0_127 = arith.constant 0 : index
    %c0_128 = arith.constant 0 : index
    %449 = vector.load %arg6[%c0_127, %c0_128] : memref<32x96xf32, #tpu.memory_space<vmem>>, vector<32x96xf32>
    %cst_129 = arith.constant dense<0.000000e+00> : vector<8x96xf32>
    %450 = tpu.matmul %448, %449, %cst_129 {dimension_numbers = #tpu.dot_dimension_numbers<[1], [0], [0], [1], [0, 0, 1, 1], [], []>} : vector<8x32xf32>, vector<32x96xf32>, vector<8x96xf32> -> vector<8x96xf32>
    %451 = vector.broadcast %11 : vector<1x96xf32> to vector<8x96xf32>
    %452 = arith.addf %450, %451 : vector<8x96xf32>
    %c0_130 = arith.constant 0 : index
    %c0_131 = arith.constant 0 : index
    %453 = vector.load %arg7[%c0_130, %c0_131] : memref<32x96xf32, #tpu.memory_space<vmem>>, vector<32x96xf32>
    %cst_132 = arith.constant dense<0.000000e+00> : vector<8x96xf32>
    %454 = tpu.matmul %415, %453, %cst_132 {dimension_numbers = #tpu.dot_dimension_numbers<[1], [0], [0], [1], [0, 0, 1, 1], [], []>} : vector<8x32xf32>, vector<32x96xf32>, vector<8x96xf32> -> vector<8x96xf32>
    %455 = vector.extract_strided_slice %452 {offsets = [0, 0], sizes = [8, 32], strides = [1, 1]} : vector<8x96xf32> to vector<8x32xf32>
    %456 = vector.extract_strided_slice %454 {offsets = [0, 0], sizes = [8, 32], strides = [1, 1]} : vector<8x96xf32> to vector<8x32xf32>
    %457 = arith.addf %455, %456 : vector<8x32xf32>
    %458 = arith.negf %457 : vector<8x32xf32>
    %459 = math.exp %458 : vector<8x32xf32>
    %cst_133 = arith.constant 1.000000e+00 : f32
    %460 = vector.broadcast %cst_133 : f32 to vector<8x32xf32>
    %461 = arith.addf %460, %459 : vector<8x32xf32>
    %462 = arith.divf %460, %461 : vector<8x32xf32>
    %463 = vector.extract_strided_slice %452 {offsets = [0, 32], sizes = [8, 32], strides = [1, 1]} : vector<8x96xf32> to vector<8x32xf32>
    %464 = vector.extract_strided_slice %454 {offsets = [0, 32], sizes = [8, 32], strides = [1, 1]} : vector<8x96xf32> to vector<8x32xf32>
    %465 = arith.addf %463, %464 : vector<8x32xf32>
    %466 = arith.negf %465 : vector<8x32xf32>
    %467 = math.exp %466 : vector<8x32xf32>
    %cst_134 = arith.constant 1.000000e+00 : f32
    %468 = vector.broadcast %cst_134 : f32 to vector<8x32xf32>
    %469 = arith.addf %468, %467 : vector<8x32xf32>
    %470 = arith.divf %468, %469 : vector<8x32xf32>
    %471 = vector.extract_strided_slice %452 {offsets = [0, 64], sizes = [8, 32], strides = [1, 1]} : vector<8x96xf32> to vector<8x32xf32>
    %472 = vector.extract_strided_slice %454 {offsets = [0, 64], sizes = [8, 32], strides = [1, 1]} : vector<8x96xf32> to vector<8x32xf32>
    %473 = vector.broadcast %10 : vector<1x32xf32> to vector<8x32xf32>
    %474 = arith.addf %472, %473 : vector<8x32xf32>
    %475 = arith.mulf %462, %474 : vector<8x32xf32>
    %476 = arith.addf %471, %475 : vector<8x32xf32>
    %477 = math.tanh %476 : vector<8x32xf32>
    %cst_135 = arith.constant 1.000000e+00 : f32
    %478 = vector.broadcast %cst_135 : f32 to vector<8x32xf32>
    %479 = arith.subf %478, %470 : vector<8x32xf32>
    %480 = arith.mulf %479, %477 : vector<8x32xf32>
    %481 = arith.mulf %470, %415 : vector<8x32xf32>
    %482 = arith.addf %480, %481 : vector<8x32xf32>
    %c7_i32 = arith.constant 7 : i32
    %c0_136 = arith.constant 0 : index
    %c0_137 = arith.constant 0 : index
    %483 = vector.load %arg3[%c0_136, %c0_137] : memref<32x96xf32, #tpu.memory_space<vmem>>, vector<32x96xf32>
    %cst_138 = arith.constant dense<0.000000e+00> : vector<8x96xf32>
    %484 = tpu.matmul %448, %483, %cst_138 {dimension_numbers = #tpu.dot_dimension_numbers<[1], [0], [0], [1], [0, 0, 1, 1], [], []>} : vector<8x32xf32>, vector<32x96xf32>, vector<8x96xf32> -> vector<8x96xf32>
    %485 = arith.index_cast %c7_i32 : i32 to index
    %c0_139 = arith.constant 0 : index
    %c0_140 = arith.constant 0 : index
    %486 = vector.load %arg11[%485, %c0_139, %c0_140] : memref<8x8x96xf32, #tpu.memory_space<vmem>>, vector<1x8x96xf32>
    %487 = vector.shape_cast %486 : vector<1x8x96xf32> to vector<8x96xf32>
    %488 = vector.extract_strided_slice %487 {offsets = [0, 0], sizes = [8, 32], strides = [1, 1]} : vector<8x96xf32> to vector<8x32xf32>
    %489 = vector.extract_strided_slice %484 {offsets = [0, 0], sizes = [8, 32], strides = [1, 1]} : vector<8x96xf32> to vector<8x32xf32>
    %490 = arith.addf %488, %489 : vector<8x32xf32>
    %491 = arith.negf %490 : vector<8x32xf32>
    %492 = math.exp %491 : vector<8x32xf32>
    %cst_141 = arith.constant 1.000000e+00 : f32
    %493 = vector.broadcast %cst_141 : f32 to vector<8x32xf32>
    %494 = arith.addf %493, %492 : vector<8x32xf32>
    %495 = arith.divf %493, %494 : vector<8x32xf32>
    %496 = vector.extract_strided_slice %487 {offsets = [0, 32], sizes = [8, 32], strides = [1, 1]} : vector<8x96xf32> to vector<8x32xf32>
    %497 = vector.extract_strided_slice %484 {offsets = [0, 32], sizes = [8, 32], strides = [1, 1]} : vector<8x96xf32> to vector<8x32xf32>
    %498 = arith.addf %496, %497 : vector<8x32xf32>
    %499 = arith.negf %498 : vector<8x32xf32>
    %500 = math.exp %499 : vector<8x32xf32>
    %cst_142 = arith.constant 1.000000e+00 : f32
    %501 = vector.broadcast %cst_142 : f32 to vector<8x32xf32>
    %502 = arith.addf %501, %500 : vector<8x32xf32>
    %503 = arith.divf %501, %502 : vector<8x32xf32>
    %504 = vector.extract_strided_slice %487 {offsets = [0, 64], sizes = [8, 32], strides = [1, 1]} : vector<8x96xf32> to vector<8x32xf32>
    %505 = vector.extract_strided_slice %484 {offsets = [0, 64], sizes = [8, 32], strides = [1, 1]} : vector<8x96xf32> to vector<8x32xf32>
    %506 = vector.broadcast %9 : vector<1x32xf32> to vector<8x32xf32>
    %507 = arith.addf %505, %506 : vector<8x32xf32>
    %508 = arith.mulf %495, %507 : vector<8x32xf32>
    %509 = arith.addf %504, %508 : vector<8x32xf32>
    %510 = math.tanh %509 : vector<8x32xf32>
    %cst_143 = arith.constant 1.000000e+00 : f32
    %511 = vector.broadcast %cst_143 : f32 to vector<8x32xf32>
    %512 = arith.subf %511, %503 : vector<8x32xf32>
    %513 = arith.mulf %512, %510 : vector<8x32xf32>
    %514 = arith.mulf %503, %448 : vector<8x32xf32>
    %515 = arith.addf %513, %514 : vector<8x32xf32>
    %c0_144 = arith.constant 0 : index
    %c0_145 = arith.constant 0 : index
    %516 = vector.load %arg6[%c0_144, %c0_145] : memref<32x96xf32, #tpu.memory_space<vmem>>, vector<32x96xf32>
    %cst_146 = arith.constant dense<0.000000e+00> : vector<8x96xf32>
    %517 = tpu.matmul %515, %516, %cst_146 {dimension_numbers = #tpu.dot_dimension_numbers<[1], [0], [0], [1], [0, 0, 1, 1], [], []>} : vector<8x32xf32>, vector<32x96xf32>, vector<8x96xf32> -> vector<8x96xf32>
    %518 = vector.broadcast %11 : vector<1x96xf32> to vector<8x96xf32>
    %519 = arith.addf %517, %518 : vector<8x96xf32>
    %c0_147 = arith.constant 0 : index
    %c0_148 = arith.constant 0 : index
    %520 = vector.load %arg7[%c0_147, %c0_148] : memref<32x96xf32, #tpu.memory_space<vmem>>, vector<32x96xf32>
    %cst_149 = arith.constant dense<0.000000e+00> : vector<8x96xf32>
    %521 = tpu.matmul %482, %520, %cst_149 {dimension_numbers = #tpu.dot_dimension_numbers<[1], [0], [0], [1], [0, 0, 1, 1], [], []>} : vector<8x32xf32>, vector<32x96xf32>, vector<8x96xf32> -> vector<8x96xf32>
    %522 = vector.extract_strided_slice %519 {offsets = [0, 0], sizes = [8, 32], strides = [1, 1]} : vector<8x96xf32> to vector<8x32xf32>
    %523 = vector.extract_strided_slice %521 {offsets = [0, 0], sizes = [8, 32], strides = [1, 1]} : vector<8x96xf32> to vector<8x32xf32>
    %524 = arith.addf %522, %523 : vector<8x32xf32>
    %525 = arith.negf %524 : vector<8x32xf32>
    %526 = math.exp %525 : vector<8x32xf32>
    %cst_150 = arith.constant 1.000000e+00 : f32
    %527 = vector.broadcast %cst_150 : f32 to vector<8x32xf32>
    %528 = arith.addf %527, %526 : vector<8x32xf32>
    %529 = arith.divf %527, %528 : vector<8x32xf32>
    %530 = vector.extract_strided_slice %519 {offsets = [0, 32], sizes = [8, 32], strides = [1, 1]} : vector<8x96xf32> to vector<8x32xf32>
    %531 = vector.extract_strided_slice %521 {offsets = [0, 32], sizes = [8, 32], strides = [1, 1]} : vector<8x96xf32> to vector<8x32xf32>
    %532 = arith.addf %530, %531 : vector<8x32xf32>
    %533 = arith.negf %532 : vector<8x32xf32>
    %534 = math.exp %533 : vector<8x32xf32>
    %cst_151 = arith.constant 1.000000e+00 : f32
    %535 = vector.broadcast %cst_151 : f32 to vector<8x32xf32>
    %536 = arith.addf %535, %534 : vector<8x32xf32>
    %537 = arith.divf %535, %536 : vector<8x32xf32>
    %538 = vector.extract_strided_slice %519 {offsets = [0, 64], sizes = [8, 32], strides = [1, 1]} : vector<8x96xf32> to vector<8x32xf32>
    %539 = vector.extract_strided_slice %521 {offsets = [0, 64], sizes = [8, 32], strides = [1, 1]} : vector<8x96xf32> to vector<8x32xf32>
    %540 = vector.broadcast %10 : vector<1x32xf32> to vector<8x32xf32>
    %541 = arith.addf %539, %540 : vector<8x32xf32>
    %542 = arith.mulf %529, %541 : vector<8x32xf32>
    %543 = arith.addf %538, %542 : vector<8x32xf32>
    %544 = math.tanh %543 : vector<8x32xf32>
    %cst_152 = arith.constant 1.000000e+00 : f32
    %545 = vector.broadcast %cst_152 : f32 to vector<8x32xf32>
    %546 = arith.subf %545, %537 : vector<8x32xf32>
    %547 = arith.mulf %546, %544 : vector<8x32xf32>
    %548 = arith.mulf %537, %482 : vector<8x32xf32>
    %549 = arith.addf %547, %548 : vector<8x32xf32>
    %c8_i32 = arith.constant 8 : i32
    %c0_153 = arith.constant 0 : index
    %c0_154 = arith.constant 0 : index
    %550 = vector.load %arg10[%c0_153, %c0_154] : memref<8x32xf32, #tpu.memory_space<vmem>>, vector<8x32xf32>
    tpu.vector_store %arg10[%c0_153, %c0_154], %549 {strides = array<i32>} : memref<8x32xf32, #tpu.memory_space<vmem>>, vector<8x32xf32>,
    return
  }
  func.func @transform_0(%arg0: i32) -> (i32, i32, i32) {
    %c0_i32 = arith.constant 0 : i32
    %c0_i32_0 = arith.constant 0 : i32
    %c0_i32_1 = arith.constant 0 : i32
    return %c0_i32, %arg0, %c0_i32_0 : i32, i32, i32
  }
  func.func @transform_1(%arg0: i32) -> (i32, i32) {
    %c0_i32 = arith.constant 0 : i32
    %c0_i32_0 = arith.constant 0 : i32
    %c0_i32_1 = arith.constant 0 : i32
    return %c0_i32, %c0_i32_0 : i32, i32
  }
  func.func @transform_2(%arg0: i32) -> (i32, i32) {
    %c0_i32 = arith.constant 0 : i32
    %c0_i32_0 = arith.constant 0 : i32
    %c0_i32_1 = arith.constant 0 : i32
    return %c0_i32, %c0_i32_0 : i32, i32
  }
  func.func @transform_3(%arg0: i32) -> (i32, i32) {
    %c0_i32 = arith.constant 0 : i32
    %c0_i32_0 = arith.constant 0 : i32
    %c0_i32_1 = arith.constant 0 : i32
    return %c0_i32, %c0_i32_0 : i32, i32
  }
  func.func @transform_4(%arg0: i32) -> (i32, i32) {
    %c0_i32 = arith.constant 0 : i32
    %c0_i32_0 = arith.constant 0 : i32
    %c0_i32_1 = arith.constant 0 : i32
    return %c0_i32, %c0_i32_0 : i32, i32
  }
  func.func @transform_5(%arg0: i32) -> (i32, i32) {
    %c0_i32 = arith.constant 0 : i32
    %c0_i32_0 = arith.constant 0 : i32
    %c0_i32_1 = arith.constant 0 : i32
    return %c0_i32, %c0_i32_0 : i32, i32
  }
  func.func @transform_6(%arg0: i32) -> (i32, i32) {
    %c0_i32 = arith.constant 0 : i32
    %c0_i32_0 = arith.constant 0 : i32
    %c0_i32_1 = arith.constant 0 : i32
    return %c0_i32, %c0_i32_0 : i32, i32
  }
  func.func @transform_7(%arg0: i32) -> (i32, i32) {
    %c0_i32 = arith.constant 0 : i32
    %c0_i32_0 = arith.constant 0 : i32
    %c0_i32_1 = arith.constant 0 : i32
    return %c0_i32, %c0_i32_0 : i32, i32
  }
  func.func @transform_8(%arg0: i32) -> (i32, i32) {
    %c0_i32 = arith.constant 0 : i32
    %c0_i32_0 = arith.constant 0 : i32
    %c0_i32_1 = arith.constant 0 : i32
    return %c0_i32, %c0_i32_0 : i32, i32
  }
  func.func @transform_9(%arg0: i32) -> (i32, i32) {
    %c0_i32 = arith.constant 0 : i32
    %c0_i32_0 = arith.constant 0 : i32
    return %arg0, %c0_i32 : i32, i32
  }
}

</mosaic_0001>

<llo_original>
// kernel: tpu_custom_call.1
$region0: #{tpu_custom_call.1}
  #allocation0 [shape = 'u32[]', space=smem, size = 0x4, offset = 0x4, fixed_abs, tag = 'smem constant byte address 0x4 - core index']
  #allocation1 [shape = 'u32[72,128]{1,0:T(1,128)}', space=vmem, size = 0x9000, scoped, tag = 'internal scratch']
  #allocation2 [shape = 'f32[8,8,96]{2,1,0:T(8,128)}', space=vmem, size = 0x8000, scoped, tag = 'scratch operand']
  %s0 = inlined_call_operand.vmem [shape: f32[8,8,6], index: 0, kind: input, shape index: {}]
  %s1 = inlined_call_operand.vmem [shape: f32[6,96], index: 1, kind: input, shape index: {}]
  %s2 = inlined_call_operand.vmem [shape: f32[32,96], index: 2, kind: input, shape index: {}]
  %s3 = inlined_call_operand.vmem [shape: f32[1,96], index: 3, kind: input, shape index: {}]
  %s4 = inlined_call_operand.vmem [shape: f32[1,32], index: 4, kind: input, shape index: {}]
  %s5 = inlined_call_operand.vmem [shape: f32[32,96], index: 5, kind: input, shape index: {}]
  %s6 = inlined_call_operand.vmem [shape: f32[32,96], index: 6, kind: input, shape index: {}]
  %s7 = inlined_call_operand.vmem [shape: f32[1,96], index: 7, kind: input, shape index: {}]
  %s8 = inlined_call_operand.vmem [shape: f32[1,32], index: 8, kind: input, shape index: {}]
  %s9 = inlined_call_operand.hbm [shape: f32[8,32], index: 9, kind: output, shape index: {}]
  %s10 = sld [smem:[#allocation0]]
  $region46: #{tpu_custom_call.1} parent=0
    _
  %s12 = ssub.s32 1, %s10
  %s13 = scalar_select 0, %s12, %s10
  $region1: #{tpu_custom_call.1} parent=0
    #allocation3 [shape = 'u8[4096]{0}', space=vmem, size = 0x1000, scoped, tag = 'output window, operand 0, single buffered']
    #allocation4 [shape = 's32[1]{0}', space=sflag, size = 0x4, scoped, tag = 'scoped memory for tpu_custom_call.1']
    %14 = vsyncpa [#allocation4], 0
    // Predicated region
    $region2: #{tpu_custom_call.1} parent=1 // pred_check
      _
    $region3: #{tpu_custom_call.1} parent=1 // pred_check_branch
      %16 = sbr.rel (0) target = $region5
    $region4: #{tpu_custom_call.1} parent=1 // pred_region
      _
    $region5: #{tpu_custom_call.1} parent=1 // pred_fallthru
      _
    // Predicated region
    $region6: #{tpu_custom_call.1} parent=1 // pred_check
      _
    $region7: #{tpu_custom_call.1} parent=1 // pred_check_branch
      %18 = sbr.rel (0) target = $region9
    $region8: #{tpu_custom_call.1} parent=1 // pred_region
      _
    $region9: #{tpu_custom_call.1} parent=1 // pred_fallthru
      _
    // Predicated region
    $region10: #{tpu_custom_call.1} parent=1 // pred_check
      _
    $region11: #{tpu_custom_call.1} parent=1 // pred_check_branch
      %20 = sbr.rel (0) target = $region13
    $region12: #{tpu_custom_call.1} parent=1 // pred_region
      _
    $region13: #{tpu_custom_call.1} parent=1 // pred_fallthru
      _
    // Predicated region
    $region14: #{tpu_custom_call.1} parent=1 // pred_check
      _
    $region15: #{tpu_custom_call.1} parent=1 // pred_check_branch
      %22 = sbr.rel (0) target = $region17
    $region16: #{tpu_custom_call.1} parent=1 // pred_region
      _
    $region17: #{tpu_custom_call.1} parent=1 // pred_fallthru
      _
    // Predicated region
    $region18: #{tpu_custom_call.1} parent=1 // pred_check
      _
    $region19: #{tpu_custom_call.1} parent=1 // pred_check_branch
      %24 = sbr.rel (0) target = $region21
    $region20: #{tpu_custom_call.1} parent=1 // pred_region
      _
    $region21: #{tpu_custom_call.1} parent=1 // pred_fallthru
      _
    // Predicated region
    $region22: #{tpu_custom_call.1} parent=1 // pred_check
      _
    $region23: #{tpu_custom_call.1} parent=1 // pred_check_branch
      %26 = sbr.rel (0) target = $region25
    $region24: #{tpu_custom_call.1} parent=1 // pred_region
      _
    $region25: #{tpu_custom_call.1} parent=1 // pred_fallthru
      _
    // Predicated region
    $region26: #{tpu_custom_call.1} parent=1 // pred_check
      _
    $region27: #{tpu_custom_call.1} parent=1 // pred_check_branch
      %28 = sbr.rel (0) target = $region29
    $region28: #{tpu_custom_call.1} parent=1 // pred_region
      _
    $region29: #{tpu_custom_call.1} parent=1 // pred_fallthru
      _
    // Predicated region
    $region30: #{tpu_custom_call.1} parent=1 // pred_check
      _
    $region31: #{tpu_custom_call.1} parent=1 // pred_check_branch
      %30 = sbr.rel (0) target = $region33
    $region32: #{tpu_custom_call.1} parent=1 // pred_region
      _
    $region33: #{tpu_custom_call.1} parent=1 // pred_fallthru
      _
    // Predicated region
    $region34: #{tpu_custom_call.1} parent=1 // pred_check
      _
    $region35: #{tpu_custom_call.1} parent=1 // pred_check_branch
      %32 = sbr.rel (0) target = $region37
    $region36: #{tpu_custom_call.1} parent=1 // pred_region
      _
    $region37: #{tpu_custom_call.1} parent=1 // pred_fallthru
      _
    %v33 = vld [vmem:[%s0] sm:$0xff]
    %v34 = vld [vmem:[%s0 + $0x8] sm:$0xff]
    %v35 = vld [vmem:[%s0 + $0x10] sm:$0xff]
    %v36 = vld [vmem:[%s0 + $0x18] sm:$0xff]
    %v37 = vld [vmem:[%s0 + $0x20] sm:$0xff]
    %v38 = vld [vmem:[%s0 + $0x28] sm:$0xff]
    %v39 = vld [vmem:[%s0 + $0x30] sm:$0xff]
    %v40 = vld [vmem:[%s0 + $0x38] sm:$0xff]
    %v41 = vld [vmem:[%s1] sm:$0x3f]
    %v42 = vld [vmem:[%s3] sm:$0x1]
    %v44 = vperm.slane %v42, 0
    %vm46 = vcmask 48128
    %v48 = vsel %vm46, %v33, 0
    %v51 = vsel %vm46, %v34, 0
    %v54 = vsel %vm46, %v35, 0
    %v57 = vsel %vm46, %v36, 0
    %v60 = vsel %vm46, %v37, 0
    %v63 = vsel %vm46, %v38, 0
    %v66 = vsel %vm46, %v39, 0
    %v69 = vsel %vm46, %v40, 0
    %vm71 = vcmask 1045504
    %v73 = vsel %vm71, %v41, 0
    %75 = vmatpush.msra.mxu0 0.0
    %76 = vmatpush.msra.mxu0 0.0
    %77 = vmatpush.msra.mxu0 0.0
    %78 = vmatpush.msra.mxu0 0.0
    %79 = vmatpush.msra.mxu0 0.0
    %80 = vmatpush.msra.mxu0 0.0
    %81 = vmatpush.msra.mxu0 0.0
    %82 = vmatpush.msra.mxu0 0.0
    %83 = vmatpush.msra.mxu0 0.0
    %84 = vmatpush.msra.mxu0 0.0
    %85 = vmatpush.msra.mxu0 0.0
    %86 = vmatpush.msra.mxu0 0.0
    %87 = vmatpush.msra.mxu0 0.0
    %88 = vmatpush.msra.mxu0 0.0
    %89 = vmatpush.msra.mxu0 0.0
    %90 = vmatpush.msra.mxu0 %v73
    %91 = vmatmul.f32.gmra.mxu0 %v48
    %v92 = vpop.f32.mrf.mxu0
    %v93 = vadd.f32 %v44, %v92
    %94 = vmatmul.f32.gmra.mxu0 %v51
    %v95 = vpop.f32.mrf.mxu0
    %v96 = vadd.f32 %v44, %v95
    %97 = vmatmul.f32.gmra.mxu0 %v54
    %v98 = vpop.f32.mrf.mxu0
    %v99 = vadd.f32 %v44, %v98
    %100 = vmatmul.f32.gmra.mxu0 %v57
    %v101 = vpop.f32.mrf.mxu0
    %v102 = vadd.f32 %v44, %v101
    %103 = vmatmul.f32.gmra.mxu0 %v60
    %v104 = vpop.f32.mrf.mxu0
    %v105 = vadd.f32 %v44, %v104
    %106 = vmatmul.f32.gmra.mxu0 %v63
    %v107 = vpop.f32.mrf.mxu0
    %v108 = vadd.f32 %v44, %v107
    %109 = vmatmul.f32.gmra.mxu0 %v66
    %v110 = vpop.f32.mrf.mxu0
    %v111 = vadd.f32 %v44, %v110
    %112 = vmatmul.f32.gmra.mxu0 %v69
    %v113 = vpop.f32.mrf.mxu0
    %v114 = vadd.f32 %v44, %v113
    %115 = vdwg.mxu0
    %vm116 = vcmask 785408
    %117 = vst.msk [vmem:[#allocation2] sm:$0xff] %vm116, %v93
    %118 = vst.msk [vmem:[#allocation2 + $0x8] sm:$0xff] %vm116, %v96
    %119 = vst.msk [vmem:[#allocation2 + $0x10] sm:$0xff] %vm116, %v99
    %120 = vst.msk [vmem:[#allocation2 + $0x18] sm:$0xff] %vm116, %v102
    %121 = vst.msk [vmem:[#allocation2 + $0x20] sm:$0xff] %vm116, %v105
    %122 = vst.msk [vmem:[#allocation2 + $0x28] sm:$0xff] %vm116, %v108
    %123 = vst.msk [vmem:[#allocation2 + $0x30] sm:$0xff] %vm116, %v111
    %124 = vst.msk [vmem:[#allocation2 + $0x38] sm:$0xff] %vm116, %v114
    %v125 = vld [vmem:[%s4] sm:$0x1]
    %v126 = vld [vmem:[%s8] sm:$0x1]
    %v127 = vld [vmem:[%s7] sm:$0x1]
    %v128 = vld [vmem:[%s2] sm:$0xff]
    %v129 = vld [vmem:[%s2 + $0x8] sm:$0xff]
    %v130 = vld [vmem:[%s2 + $0x10] sm:$0xff]
    %v131 = vld [vmem:[%s2 + $0x18] sm:$0xff]
    %vm132 = vcmask 261120
    %v134 = vsel %vm132, 0.0, 0
    %136 = vmatpush.msra.mxu0 0.0
    %137 = vmatpush.msra.mxu0 0.0
    %138 = vmatpush.msra.mxu0 0.0
    %139 = vmatpush.msra.mxu0 0.0
    %140 = vmatpush.msra.mxu0 0.0
    %141 = vmatpush.msra.mxu0 0.0
    %142 = vmatpush.msra.mxu0 0.0
    %143 = vmatpush.msra.mxu0 0.0
    %144 = vmatpush.msra.mxu0 0.0
    %145 = vmatpush.msra.mxu0 0.0
    %146 = vmatpush.msra.mxu0 0.0
    %147 = vmatpush.msra.mxu0 0.0
    %148 = vmatpush.msra.mxu0 %v131
    %149 = vmatpush.msra.mxu0 %v130
    %150 = vmatpush.msra.mxu0 %v129
    %151 = vmatpush.msra.mxu0 %v128
    %152 = vmatmul.f32.gmra.mxu0 %v134
    %v153 = vpop.f32.mrf.mxu0
    %v154 = vadd.f32 0.0, %v153
    %155 = vdwg.mxu0
    %v156 = vld [vmem:[#allocation2] sm:$0xff]
    %v157 = vadd.f32 %v156, %v154
    %v158 = vxor.u32 %v157, 2147483648
    %v159 = vmul.f32 %v158, 1.442695
    %v160 = vpow.pop %v159
    %v161 = vadd.f32 %v160, 1.0
    %v162 = vrcp.pop %v161
    %v163 = vmul.f32 %v161, %v162
    %v164 = vsub.f32 1.0, %v163
    %v165 = vmul.f32 %v162, %v164
    %v166 = vadd.f32 %v162, %v165
    %vm167 = vweird.f32 %v161
    %vm168 = vweird.f32 %v162
    %vm169 = vmor %vm167, %vm168
    %v170 = vsel %vm169, %v162, %v166
    %v171 = vand.u32 2147483647, %v161
    %vm172 = vcmp.eq.f32.partialorder %v171, 8.507059e+37
    %v173 = vand.u32 %v161, 2147483648
    %v174 = vor.u32 1.1754944e-38, %v173
    %v175 = vsel %vm172, %v174, %v170
    %v176 = vmul.f32 1.0, %v175
    %v178 = vperm.slane %v125, 0
    %179 = vrot.lane.b32.xlu0 %v178, 64
    %v180 = vpop.permute.xlu0 %179
    %v182 = vadd.f32 %v154, %v180
    %184 = vrot.lane.b32.xlu0 %v182, 64
    %v185 = vpop.permute.xlu0 %184
    %v187 = vmul.f32 %v176, %v185
    %189 = vrot.lane.b32.xlu0 %v187, 64
    %v190 = vpop.permute.xlu0 %189
    %v192 = vadd.f32 %v156, %v190
    %v193 = vtanh.pop %v192
    %v194 = vsub.f32 1.0, %v176
    %196 = vrot.lane.b32.xlu0 %v193, 96
    %v197 = vpop.permute.xlu0 %196
    %v199 = vmul.f32 %v194, %v197
    %v200 = vmul.f32 %v176, 0.0
    %v201 = vadd.f32 %v199, %v200
    %v202 = vld [vmem:[%s5] sm:$0xff]
    %v203 = vld [vmem:[%s5 + $0x8] sm:$0xff]
    %v204 = vld [vmem:[%s5 + $0x10] sm:$0xff]
    %v205 = vld [vmem:[%s5 + $0x18] sm:$0xff]
    %v207 = vperm.slane %v127, 0
    %210 = vrot.lane.b32.xlu0 %v201, 96
    %v211 = vpop.permute.xlu0 %210
    %v212 = vsel %vm132, %v211, 0
    %214 = vmatpush.msra.mxu0 0.0
    %215 = vmatpush.msra.mxu0 0.0
    %216 = vmatpush.msra.mxu0 0.0
    %217 = vmatpush.msra.mxu0 0.0
    %218 = vmatpush.msra.mxu0 0.0
    %219 = vmatpush.msra.mxu0 0.0
    %220 = vmatpush.msra.mxu0 0.0
    %221 = vmatpush.msra.mxu0 0.0
    %222 = vmatpush.msra.mxu0 0.0
    %223 = vmatpush.msra.mxu0 0.0
    %224 = vmatpush.msra.mxu0 0.0
    %225 = vmatpush.msra.mxu0 0.0
    %226 = vmatpush.msra.mxu0 %v205
    %227 = vmatpush.msra.mxu0 %v204
    %228 = vmatpush.msra.mxu0 %v203
    %229 = vmatpush.msra.mxu0 %v202
    %230 = vmatmul.f32.gmra.mxu0 %v212
    %v231 = vpop.f32.mrf.mxu0
    %v232 = vadd.f32 %v207, %v231
    %233 = vdwg.mxu0
    %v234 = vld [vmem:[%s6] sm:$0xff]
    %v235 = vld [vmem:[%s6 + $0x8] sm:$0xff]
    %v236 = vld [vmem:[%s6 + $0x10] sm:$0xff]
    %v237 = vld [vmem:[%s6 + $0x18] sm:$0xff]
    %238 = vmatpush.msra.mxu0 0.0
    %239 = vmatpush.msra.mxu0 0.0
    %240 = vmatpush.msra.mxu0 0.0
    %241 = vmatpush.msra.mxu0 0.0
    %242 = vmatpush.msra.mxu0 0.0
    %243 = vmatpush.msra.mxu0 0.0
    %244 = vmatpush.msra.mxu0 0.0
    %245 = vmatpush.msra.mxu0 0.0
    %246 = vmatpush.msra.mxu0 0.0
    %247 = vmatpush.msra.mxu0 0.0
    %248 = vmatpush.msra.mxu0 0.0
    %249 = vmatpush.msra.mxu0 0.0
    %250 = vmatpush.msra.mxu0 %v237
    %251 = vmatpush.msra.mxu0 %v236
    %252 = vmatpush.msra.mxu0 %v235
    %253 = vmatpush.msra.mxu0 %v234
    %254 = vmatmul.f32.gmra.mxu0 %v134
    %v255 = vpop.f32.mrf.mxu0
    %v256 = vadd.f32 0.0, %v255
    %257 = vdwg.mxu0
    %v258 = vadd.f32 %v232, %v256
    %v259 = vxor.u32 %v258, 2147483648
    %v260 = vmul.f32 %v259, 1.442695
    %v261 = vpow.pop %v260
    %v262 = vadd.f32 %v261, 1.0
    %v263 = vrcp.pop %v262
    %v264 = vmul.f32 %v262, %v263
    %v265 = vsub.f32 1.0, %v264
    %v266 = vmul.f32 %v263, %v265
    %v267 = vadd.f32 %v263, %v266
    %vm268 = vweird.f32 %v262
    %vm269 = vweird.f32 %v263
    %vm270 = vmor %vm268, %vm269
    %v271 = vsel %vm270, %v263, %v267
    %v272 = vand.u32 2147483647, %v262
    %vm273 = vcmp.eq.f32.partialorder %v272, 8.507059e+37
    %v274 = vand.u32 %v262, 2147483648
    %v275 = vor.u32 1.1754944e-38, %v274
    %v276 = vsel %vm273, %v275, %v271
    %v277 = vmul.f32 1.0, %v276
    %v279 = vperm.slane %v126, 0
    %280 = vrot.lane.b32.xlu0 %v279, 64
    %v281 = vpop.permute.xlu0 %280
    %v283 = vadd.f32 %v256, %v281
    %285 = vrot.lane.b32.xlu0 %v283, 64
    %v286 = vpop.permute.xlu0 %285
    %v288 = vmul.f32 %v277, %v286
    %290 = vrot.lane.b32.xlu0 %v288, 64
    %v291 = vpop.permute.xlu0 %290
    %v293 = vadd.f32 %v232, %v291
    %v294 = vtanh.pop %v293
    %v295 = vsub.f32 1.0, %v277
    %297 = vrot.lane.b32.xlu0 %v294, 96
    %v298 = vpop.permute.xlu0 %297
    %v300 = vmul.f32 %v295, %v298
    %v301 = vmul.f32 %v277, 0.0
    %v302 = vadd.f32 %v300, %v301
    %303 = vmatpush.msra.mxu0 0.0
    %304 = vmatpush.msra.mxu0 0.0
    %305 = vmatpush.msra.mxu0 0.0
    %306 = vmatpush.msra.mxu0 0.0
    %307 = vmatpush.msra.mxu0 0.0
    %308 = vmatpush.msra.mxu0 0.0
    %309 = vmatpush.msra.mxu0 0.0
    %310 = vmatpush.msra.mxu0 0.0
    %311 = vmatpush.msra.mxu0 0.0
    %312 = vmatpush.msra.mxu0 0.0
    %313 = vmatpush.msra.mxu0 0.0
    %314 = vmatpush.msra.mxu0 0.0
    %315 = vmatpush.msra.mxu0 %v131
    %316 = vmatpush.msra.mxu0 %v130
    %317 = vmatpush.msra.mxu0 %v129
    %318 = vmatpush.msra.mxu0 %v128
    %319 = vmatmul.f32.gmra.mxu0 %v212
    %v320 = vpop.f32.mrf.mxu0
    %v321 = vadd.f32 0.0, %v320
    %322 = vdwg.mxu0
    %s323 = scalar_lea.vmem [#allocation2], 8
    %v324 = vld [vmem:[%s323] sm:$0xff]
    %v325 = vadd.f32 %v324, %v321
    %v326 = vxor.u32 %v325, 2147483648
    %v327 = vmul.f32 %v326, 1.442695
    %v328 = vpow.pop %v327
    %v329 = vadd.f32 %v328, 1.0
    %v330 = vrcp.pop %v329
    %v331 = vmul.f32 %v329, %v330
    %v332 = vsub.f32 1.0, %v331
    %v333 = vmul.f32 %v330, %v332
    %v334 = vadd.f32 %v330, %v333
    %vm335 = vweird.f32 %v329
    %vm336 = vweird.f32 %v330
    %vm337 = vmor %vm335, %vm336
    %v338 = vsel %vm337, %v330, %v334
    %v339 = vand.u32 2147483647, %v329
    %vm340 = vcmp.eq.f32.partialorder %v339, 8.507059e+37
    %v341 = vand.u32 %v329, 2147483648
    %v342 = vor.u32 1.1754944e-38, %v341
    %v343 = vsel %vm340, %v342, %v338
    %v344 = vmul.f32 1.0, %v343
    %v345 = vadd.f32 %v321, %v180
    %347 = vrot.lane.b32.xlu0 %v345, 64
    %v348 = vpop.permute.xlu0 %347
    %v350 = vmul.f32 %v344, %v348
    %352 = vrot.lane.b32.xlu0 %v350, 64
    %v353 = vpop.permute.xlu0 %352
    %v355 = vadd.f32 %v324, %v353
    %v356 = vtanh.pop %v355
    %v357 = vsub.f32 1.0, %v344
    %359 = vrot.lane.b32.xlu0 %v356, 96
    %v360 = vpop.permute.xlu0 %359
    %v362 = vmul.f32 %v357, %v360
    %v363 = vmul.f32 %v344, %v201
    %v364 = vadd.f32 %v362, %v363
    %366 = vrot.lane.b32.xlu0 %v364, 96
    %v367 = vpop.permute.xlu0 %366
    %v368 = vsel %vm132, %v367, 0
    %370 = vmatpush.msra.mxu0 0.0
    %371 = vmatpush.msra.mxu0 0.0
    %372 = vmatpush.msra.mxu0 0.0
    %373 = vmatpush.msra.mxu0 0.0
    %374 = vmatpush.msra.mxu0 0.0
    %375 = vmatpush.msra.mxu0 0.0
    %376 = vmatpush.msra.mxu0 0.0
    %377 = vmatpush.msra.mxu0 0.0
    %378 = vmatpush.msra.mxu0 0.0
    %379 = vmatpush.msra.mxu0 0.0
    %380 = vmatpush.msra.mxu0 0.0
    %381 = vmatpush.msra.mxu0 0.0
    %382 = vmatpush.msra.mxu0 %v205
    %383 = vmatpush.msra.mxu0 %v204
    %384 = vmatpush.msra.mxu0 %v203
    %385 = vmatpush.msra.mxu0 %v202
    %386 = vmatmul.f32.gmra.mxu0 %v368
    %v387 = vpop.f32.mrf.mxu0
    %v388 = vadd.f32 %v207, %v387
    %389 = vdwg.mxu0
    %391 = vrot.lane.b32.xlu0 %v302, 96
    %v392 = vpop.permute.xlu0 %391
    %v393 = vsel %vm132, %v392, 0
    %395 = vmatpush.msra.mxu0 0.0
    %396 = vmatpush.msra.mxu0 0.0
    %397 = vmatpush.msra.mxu0 0.0
    %398 = vmatpush.msra.mxu0 0.0
    %399 = vmatpush.msra.mxu0 0.0
    %400 = vmatpush.msra.mxu0 0.0
    %401 = vmatpush.msra.mxu0 0.0
    %402 = vmatpush.msra.mxu0 0.0
    %403 = vmatpush.msra.mxu0 0.0
    %404 = vmatpush.msra.mxu0 0.0
    %405 = vmatpush.msra.mxu0 0.0
    %406 = vmatpush.msra.mxu0 0.0
    %407 = vmatpush.msra.mxu0 %v237
    %408 = vmatpush.msra.mxu0 %v236
    %409 = vmatpush.msra.mxu0 %v235
    %410 = vmatpush.msra.mxu0 %v234
    %411 = vmatmul.f32.gmra.mxu0 %v393
    %v412 = vpop.f32.mrf.mxu0
    %v413 = vadd.f32 0.0, %v412
    %414 = vdwg.mxu0
    %v415 = vadd.f32 %v388, %v413
    %v416 = vxor.u32 %v415, 2147483648
    %v417 = vmul.f32 %v416, 1.442695
    %v418 = vpow.pop %v417
    %v419 = vadd.f32 %v418, 1.0
    %v420 = vrcp.pop %v419
    %v421 = vmul.f32 %v419, %v420
    %v422 = vsub.f32 1.0, %v421
    %v423 = vmul.f32 %v420, %v422
    %v424 = vadd.f32 %v420, %v423
    %vm425 = vweird.f32 %v419
    %vm426 = vweird.f32 %v420
    %vm427 = vmor %vm425, %vm426
    %v428 = vsel %vm427, %v420, %v424
    %v429 = vand.u32 2147483647, %v419
    %vm430 = vcmp.eq.f32.partialorder %v429, 8.507059e+37
    %v431 = vand.u32 %v419, 2147483648
    %v432 = vor.u32 1.1754944e-38, %v431
    %v433 = vsel %vm430, %v432, %v428
    %v434 = vmul.f32 1.0, %v433
    %v435 = vadd.f32 %v413, %v281
    %437 = vrot.lane.b32.xlu0 %v435, 64
    %v438 = vpop.permute.xlu0 %437
    %v440 = vmul.f32 %v434, %v438
    %442 = vrot.lane.b32.xlu0 %v440, 64
    %v443 = vpop.permute.xlu0 %442
    %v445 = vadd.f32 %v388, %v443
    %v446 = vtanh.pop %v445
    %v447 = vsub.f32 1.0, %v434
    %449 = vrot.lane.b32.xlu0 %v446, 96
    %v450 = vpop.permute.xlu0 %449
    %v452 = vmul.f32 %v447, %v450
    %v453 = vmul.f32 %v434, %v302
    %v454 = vadd.f32 %v452, %v453
    %455 = vmatpush.msra.mxu0 0.0
    %456 = vmatpush.msra.mxu0 0.0
    %457 = vmatpush.msra.mxu0 0.0
    %458 = vmatpush.msra.mxu0 0.0
    %459 = vmatpush.msra.mxu0 0.0
    %460 = vmatpush.msra.mxu0 0.0
    %461 = vmatpush.msra.mxu0 0.0
    %462 = vmatpush.msra.mxu0 0.0
    %463 = vmatpush.msra.mxu0 0.0
    %464 = vmatpush.msra.mxu0 0.0
    %465 = vmatpush.msra.mxu0 0.0
    %466 = vmatpush.msra.mxu0 0.0
    %467 = vmatpush.msra.mxu0 %v131
    %468 = vmatpush.msra.mxu0 %v130
    %469 = vmatpush.msra.mxu0 %v129
    %470 = vmatpush.msra.mxu0 %v128
    %471 = vmatmul.f32.gmra.mxu0 %v368
    %v472 = vpop.f32.mrf.mxu0
    %v473 = vadd.f32 0.0, %v472
    %474 = vdwg.mxu0
    %s475 = scalar_lea.vmem [#allocation2], 16
    %v476 = vld [vmem:[%s475] sm:$0xff]
    %v477 = vadd.f32 %v476, %v473
    %v478 = vxor.u32 %v477, 2147483648
    %v479 = vmul.f32 %v478, 1.442695
    %v480 = vpow.pop %v479
    %v481 = vadd.f32 %v480, 1.0
    %v482 = vrcp.pop %v481
    %v483 = vmul.f32 %v481, %v482
    %v484 = vsub.f32 1.0, %v483
    %v485 = vmul.f32 %v482, %v484
    %v486 = vadd.f32 %v482, %v485
    %vm487 = vweird.f32 %v481
    %vm488 = vweird.f32 %v482
    %vm489 = vmor %vm487, %vm488
    %v490 = vsel %vm489, %v482, %v486
    %v491 = vand.u32 2147483647, %v481
    %vm492 = vcmp.eq.f32.partialorder %v491, 8.507059e+37
    %v493 = vand.u32 %v481, 2147483648
    %v494 = vor.u32 1.1754944e-38, %v493
    %v495 = vsel %vm492, %v494, %v490
    %v496 = vmul.f32 1.0, %v495
    %v497 = vadd.f32 %v473, %v180
    %499 = vrot.lane.b32.xlu0 %v497, 64
    %v500 = vpop.permute.xlu0 %499
    %v502 = vmul.f32 %v496, %v500
    %504 = vrot.lane.b32.xlu0 %v502, 64
    %v505 = vpop.permute.xlu0 %504
    %v507 = vadd.f32 %v476, %v505
    %v508 = vtanh.pop %v507
    %v509 = vsub.f32 1.0, %v496
    %511 = vrot.lane.b32.xlu0 %v508, 96
    %v512 = vpop.permute.xlu0 %511
    %v514 = vmul.f32 %v509, %v512
    %v515 = vmul.f32 %v496, %v364
    %v516 = vadd.f32 %v514, %v515
    %518 = vrot.lane.b32.xlu0 %v516, 96
    %v519 = vpop.permute.xlu0 %518
    %v520 = vsel %vm132, %v519, 0
    %522 = vmatpush.msra.mxu0 0.0
    %523 = vmatpush.msra.mxu0 0.0
    %524 = vmatpush.msra.mxu0 0.0
    %525 = vmatpush.msra.mxu0 0.0
    %526 = vmatpush.msra.mxu0 0.0
    %527 = vmatpush.msra.mxu0 0.0
    %528 = vmatpush.msra.mxu0 0.0
    %529 = vmatpush.msra.mxu0 0.0
    %530 = vmatpush.msra.mxu0 0.0
    %531 = vmatpush.msra.mxu0 0.0
    %532 = vmatpush.msra.mxu0 0.0
    %533 = vmatpush.msra.mxu0 0.0
    %534 = vmatpush.msra.mxu0 %v205
    %535 = vmatpush.msra.mxu0 %v204
    %536 = vmatpush.msra.mxu0 %v203
    %537 = vmatpush.msra.mxu0 %v202
    %538 = vmatmul.f32.gmra.mxu0 %v520
    %v539 = vpop.f32.mrf.mxu0
    %v540 = vadd.f32 %v207, %v539
    %541 = vdwg.mxu0
    %543 = vrot.lane.b32.xlu0 %v454, 96
    %v544 = vpop.permute.xlu0 %543
    %v545 = vsel %vm132, %v544, 0
    %547 = vmatpush.msra.mxu0 0.0
    %548 = vmatpush.msra.mxu0 0.0
    %549 = vmatpush.msra.mxu0 0.0
    %550 = vmatpush.msra.mxu0 0.0
    %551 = vmatpush.msra.mxu0 0.0
    %552 = vmatpush.msra.mxu0 0.0
    %553 = vmatpush.msra.mxu0 0.0
    %554 = vmatpush.msra.mxu0 0.0
    %555 = vmatpush.msra.mxu0 0.0
    %556 = vmatpush.msra.mxu0 0.0
    %557 = vmatpush.msra.mxu0 0.0
    %558 = vmatpush.msra.mxu0 0.0
    %559 = vmatpush.msra.mxu0 %v237
    %560 = vmatpush.msra.mxu0 %v236
    %561 = vmatpush.msra.mxu0 %v235
    %562 = vmatpush.msra.mxu0 %v234
    %563 = vmatmul.f32.gmra.mxu0 %v545
    %v564 = vpop.f32.mrf.mxu0
    %v565 = vadd.f32 0.0, %v564
    %566 = vdwg.mxu0
    %v567 = vadd.f32 %v540, %v565
    %v568 = vxor.u32 %v567, 2147483648
    %v569 = vmul.f32 %v568, 1.442695
    %v570 = vpow.pop %v569
    %v571 = vadd.f32 %v570, 1.0
    %v572 = vrcp.pop %v571
    %v573 = vmul.f32 %v571, %v572
    %v574 = vsub.f32 1.0, %v573
    %v575 = vmul.f32 %v572, %v574
    %v576 = vadd.f32 %v572, %v575
    %vm577 = vweird.f32 %v571
    %vm578 = vweird.f32 %v572
    %vm579 = vmor %vm577, %vm578
    %v580 = vsel %vm579, %v572, %v576
    %v581 = vand.u32 2147483647, %v571
    %vm582 = vcmp.eq.f32.partialorder %v581, 8.507059e+37
    %v583 = vand.u32 %v571, 2147483648
    %v584 = vor.u32 1.1754944e-38, %v583
    %v585 = vsel %vm582, %v584, %v580
    %v586 = vmul.f32 1.0, %v585
    %v587 = vadd.f32 %v565, %v281
    %589 = vrot.lane.b32.xlu0 %v587, 64
    %v590 = vpop.permute.xlu0 %589
    %v592 = vmul.f32 %v586, %v590
    %594 = vrot.lane.b32.xlu0 %v592, 64
    %v595 = vpop.permute.xlu0 %594
    %v597 = vadd.f32 %v540, %v595
    %v598 = vtanh.pop %v597
    %v599 = vsub.f32 1.0, %v586
    %601 = vrot.lane.b32.xlu0 %v598, 96
    %v602 = vpop.permute.xlu0 %601
    %v604 = vmul.f32 %v599, %v602
    %v605 = vmul.f32 %v586, %v454
    %v606 = vadd.f32 %v604, %v605
    %607 = vmatpush.msra.mxu0 0.0
    %608 = vmatpush.msra.mxu0 0.0
    %609 = vmatpush.msra.mxu0 0.0
    %610 = vmatpush.msra.mxu0 0.0
    %611 = vmatpush.msra.mxu0 0.0
    %612 = vmatpush.msra.mxu0 0.0
    %613 = vmatpush.msra.mxu0 0.0
    %614 = vmatpush.msra.mxu0 0.0
    %615 = vmatpush.msra.mxu0 0.0
    %616 = vmatpush.msra.mxu0 0.0
    %617 = vmatpush.msra.mxu0 0.0
    %618 = vmatpush.msra.mxu0 0.0
    %619 = vmatpush.msra.mxu0 %v131
    %620 = vmatpush.msra.mxu0 %v130
    %621 = vmatpush.msra.mxu0 %v129
    %622 = vmatpush.msra.mxu0 %v128
    %623 = vmatmul.f32.gmra.mxu0 %v520
    %v624 = vpop.f32.mrf.mxu0
    %v625 = vadd.f32 0.0, %v624
    %626 = vdwg.mxu0
    %s627 = scalar_lea.vmem [#allocation2], 24
    %v628 = vld [vmem:[%s627] sm:$0xff]
    %v629 = vadd.f32 %v628, %v625
    %v630 = vxor.u32 %v629, 2147483648
    %v631 = vmul.f32 %v630, 1.442695
    %v632 = vpow.pop %v631
    %v633 = vadd.f32 %v632, 1.0
    %v634 = vrcp.pop %v633
    %v635 = vmul.f32 %v633, %v634
    %v636 = vsub.f32 1.0, %v635
    %v637 = vmul.f32 %v634, %v636
    %v638 = vadd.f32 %v634, %v637
    %vm639 = vweird.f32 %v633
    %vm640 = vweird.f32 %v634
    %vm641 = vmor %vm639, %vm640
    %v642 = vsel %vm641, %v634, %v638
    %v643 = vand.u32 2147483647, %v633
    %vm644 = vcmp.eq.f32.partialorder %v643, 8.507059e+37
    %v645 = vand.u32 %v633, 2147483648
    %v646 = vor.u32 1.1754944e-38, %v645
    %v647 = vsel %vm644, %v646, %v642
    %v648 = vmul.f32 1.0, %v647
    %v649 = vadd.f32 %v625, %v180
    %651 = vrot.lane.b32.xlu0 %v649, 64
    %v652 = vpop.permute.xlu0 %651
    %v654 = vmul.f32 %v648, %v652
    %656 = vrot.lane.b32.xlu0 %v654, 64
    %v657 = vpop.permute.xlu0 %656
    %v659 = vadd.f32 %v628, %v657
    %v660 = vtanh.pop %v659
    %v661 = vsub.f32 1.0, %v648
    %663 = vrot.lane.b32.xlu0 %v660, 96
    %v664 = vpop.permute.xlu0 %663
    %v666 = vmul.f32 %v661, %v664
    %v667 = vmul.f32 %v648, %v516
    %v668 = vadd.f32 %v666, %v667
    %670 = vrot.lane.b32.xlu0 %v668, 96
    %v671 = vpop.permute.xlu0 %670
    %v672 = vsel %vm132, %v671, 0
    %674 = vmatpush.msra.mxu0 0.0
    %675 = vmatpush.msra.mxu0 0.0
    %676 = vmatpush.msra.mxu0 0.0
    %677 = vmatpush.msra.mxu0 0.0
    %678 = vmatpush.msra.mxu0 0.0
    %679 = vmatpush.msra.mxu0 0.0
    %680 = vmatpush.msra.mxu0 0.0
    %681 = vmatpush.msra.mxu0 0.0
    %682 = vmatpush.msra.mxu0 0.0
    %683 = vmatpush.msra.mxu0 0.0
    %684 = vmatpush.msra.mxu0 0.0
    %685 = vmatpush.msra.mxu0 0.0
    %686 = vmatpush.msra.mxu0 %v205
    %687 = vmatpush.msra.mxu0 %v204
    %688 = vmatpush.msra.mxu0 %v203
    %689 = vmatpush.msra.mxu0 %v202
    %690 = vmatmul.f32.gmra.mxu0 %v672
    %v691 = vpop.f32.mrf.mxu0
    %v692 = vadd.f32 %v207, %v691
    %693 = vdwg.mxu0
    %695 = vrot.lane.b32.xlu0 %v606, 96
    %v696 = vpop.permute.xlu0 %695
    %v697 = vsel %vm132, %v696, 0
    %699 = vmatpush.msra.mxu0 0.0
    %700 = vmatpush.msra.mxu0 0.0
    %701 = vmatpush.msra.mxu0 0.0
    %702 = vmatpush.msra.mxu0 0.0
    %703 = vmatpush.msra.mxu0 0.0
    %704 = vmatpush.msra.mxu0 0.0
    %705 = vmatpush.msra.mxu0 0.0
    %706 = vmatpush.msra.mxu0 0.0
    %707 = vmatpush.msra.mxu0 0.0
    %708 = vmatpush.msra.mxu0 0.0
    %709 = vmatpush.msra.mxu0 0.0
    %710 = vmatpush.msra.mxu0 0.0
    %711 = vmatpush.msra.mxu0 %v237
    %712 = vmatpush.msra.mxu0 %v236
    %713 = vmatpush.msra.mxu0 %v235
    %714 = vmatpush.msra.mxu0 %v234
    %715 = vmatmul.f32.gmra.mxu0 %v697
    %v716 = vpop.f32.mrf.mxu0
    %v717 = vadd.f32 0.0, %v716
    %718 = vdwg.mxu0
    %v719 = vadd.f32 %v692, %v717
    %v720 = vxor.u32 %v719, 2147483648
    %v721 = vmul.f32 %v720, 1.442695
    %v722 = vpow.pop %v721
    %v723 = vadd.f32 %v722, 1.0
    %v724 = vrcp.pop %v723
    %v725 = vmul.f32 %v723, %v724
    %v726 = vsub.f32 1.0, %v725
    %v727 = vmul.f32 %v724, %v726
    %v728 = vadd.f32 %v724, %v727
    %vm729 = vweird.f32 %v723
    %vm730 = vweird.f32 %v724
    %vm731 = vmor %vm729, %vm730
    %v732 = vsel %vm731, %v724, %v728
    %v733 = vand.u32 2147483647, %v723
    %vm734 = vcmp.eq.f32.partialorder %v733, 8.507059e+37
    %v735 = vand.u32 %v723, 2147483648
    %v736 = vor.u32 1.1754944e-38, %v735
    %v737 = vsel %vm734, %v736, %v732
    %v738 = vmul.f32 1.0, %v737
    %v739 = vadd.f32 %v717, %v281
    %741 = vrot.lane.b32.xlu0 %v739, 64
    %v742 = vpop.permute.xlu0 %741
    %v744 = vmul.f32 %v738, %v742
    %746 = vrot.lane.b32.xlu0 %v744, 64
    %v747 = vpop.permute.xlu0 %746
    %v749 = vadd.f32 %v692, %v747
    %v750 = vtanh.pop %v749
    %v751 = vsub.f32 1.0, %v738
    %753 = vrot.lane.b32.xlu0 %v750, 96
    %v754 = vpop.permute.xlu0 %753
    %v756 = vmul.f32 %v751, %v754
    %v757 = vmul.f32 %v738, %v606
    %v758 = vadd.f32 %v756, %v757
    %759 = vmatpush.msra.mxu0 0.0
    %760 = vmatpush.msra.mxu0 0.0
    %761 = vmatpush.msra.mxu0 0.0
    %762 = vmatpush.msra.mxu0 0.0
    %763 = vmatpush.msra.mxu0 0.0
    %764 = vmatpush.msra.mxu0 0.0
    %765 = vmatpush.msra.mxu0 0.0
    %766 = vmatpush.msra.mxu0 0.0
    %767 = vmatpush.msra.mxu0 0.0
    %768 = vmatpush.msra.mxu0 0.0
    %769 = vmatpush.msra.mxu0 0.0
    %770 = vmatpush.msra.mxu0 0.0
    %771 = vmatpush.msra.mxu0 %v131
    %772 = vmatpush.msra.mxu0 %v130
    %773 = vmatpush.msra.mxu0 %v129
    %774 = vmatpush.msra.mxu0 %v128
    %775 = vmatmul.f32.gmra.mxu0 %v672
    %v776 = vpop.f32.mrf.mxu0
    %v777 = vadd.f32 0.0, %v776
    %778 = vdwg.mxu0
    %s779 = scalar_lea.vmem [#allocation2], 32
    %v780 = vld [vmem:[%s779] sm:$0xff]
    %v781 = vadd.f32 %v780, %v777
    %v782 = vxor.u32 %v781, 2147483648
    %v783 = vmul.f32 %v782, 1.442695
    %v784 = vpow.pop %v783
    %v785 = vadd.f32 %v784, 1.0
    %v786 = vrcp.pop %v785
    %v787 = vmul.f32 %v785, %v786
    %v788 = vsub.f32 1.0, %v787
    %v789 = vmul.f32 %v786, %v788
    %v790 = vadd.f32 %v786, %v789
    %vm791 = vweird.f32 %v785
    %vm792 = vweird.f32 %v786
    %vm793 = vmor %vm791, %vm792
    %v794 = vsel %vm793, %v786, %v790
    %v795 = vand.u32 2147483647, %v785
    %vm796 = vcmp.eq.f32.partialorder %v795, 8.507059e+37
    %v797 = vand.u32 %v785, 2147483648
    %v798 = vor.u32 1.1754944e-38, %v797
    %v799 = vsel %vm796, %v798, %v794
    %v800 = vmul.f32 1.0, %v799
    %v801 = vadd.f32 %v777, %v180
    %803 = vrot.lane.b32.xlu0 %v801, 64
    %v804 = vpop.permute.xlu0 %803
    %v806 = vmul.f32 %v800, %v804
    %808 = vrot.lane.b32.xlu0 %v806, 64
    %v809 = vpop.permute.xlu0 %808
    %v811 = vadd.f32 %v780, %v809
    %v812 = vtanh.pop %v811
    %v813 = vsub.f32 1.0, %v800
    %815 = vrot.lane.b32.xlu0 %v812, 96
    %v816 = vpop.permute.xlu0 %815
    %v818 = vmul.f32 %v813, %v816
    %v819 = vmul.f32 %v800, %v668
    %v820 = vadd.f32 %v818, %v819
    %822 = vrot.lane.b32.xlu0 %v820, 96
    %v823 = vpop.permute.xlu0 %822
    %v824 = vsel %vm132, %v823, 0
    %826 = vmatpush.msra.mxu0 0.0
    %827 = vmatpush.msra.mxu0 0.0
    %828 = vmatpush.msra.mxu0 0.0
    %829 = vmatpush.msra.mxu0 0.0
    %830 = vmatpush.msra.mxu0 0.0
    %831 = vmatpush.msra.mxu0 0.0
    %832 = vmatpush.msra.mxu0 0.0
    %833 = vmatpush.msra.mxu0 0.0
    %834 = vmatpush.msra.mxu0 0.0
    %835 = vmatpush.msra.mxu0 0.0
    %836 = vmatpush.msra.mxu0 0.0
    %837 = vmatpush.msra.mxu0 0.0
    %838 = vmatpush.msra.mxu0 %v205
    %839 = vmatpush.msra.mxu0 %v204
    %840 = vmatpush.msra.mxu0 %v203
    %841 = vmatpush.msra.mxu0 %v202
    %842 = vmatmul.f32.gmra.mxu0 %v824
    %v843 = vpop.f32.mrf.mxu0
    %v844 = vadd.f32 %v207, %v843
    %845 = vdwg.mxu0
    %847 = vrot.lane.b32.xlu0 %v758, 96
    %v848 = vpop.permute.xlu0 %847
    %v849 = vsel %vm132, %v848, 0
    %851 = vmatpush.msra.mxu0 0.0
    %852 = vmatpush.msra.mxu0 0.0
    %853 = vmatpush.msra.mxu0 0.0
    %854 = vmatpush.msra.mxu0 0.0
    %855 = vmatpush.msra.mxu0 0.0
    %856 = vmatpush.msra.mxu0 0.0
    %857 = vmatpush.msra.mxu0 0.0
    %858 = vmatpush.msra.mxu0 0.0
    %859 = vmatpush.msra.mxu0 0.0
    %860 = vmatpush.msra.mxu0 0.0
    %861 = vmatpush.msra.mxu0 0.0
    %862 = vmatpush.msra.mxu0 0.0
    %863 = vmatpush.msra.mxu0 %v237
    %864 = vmatpush.msra.mxu0 %v236
    %865 = vmatpush.msra.mxu0 %v235
    %866 = vmatpush.msra.mxu0 %v234
    %867 = vmatmul.f32.gmra.mxu0 %v849
    %v868 = vpop.f32.mrf.mxu0
    %v869 = vadd.f32 0.0, %v868
    %870 = vdwg.mxu0
    %v871 = vadd.f32 %v844, %v869
    %v872 = vxor.u32 %v871, 2147483648
    %v873 = vmul.f32 %v872, 1.442695
    %v874 = vpow.pop %v873
    %v875 = vadd.f32 %v874, 1.0
    %v876 = vrcp.pop %v875
    %v877 = vmul.f32 %v875, %v876
    %v878 = vsub.f32 1.0, %v877
    %v879 = vmul.f32 %v876, %v878
    %v880 = vadd.f32 %v876, %v879
    %vm881 = vweird.f32 %v875
    %vm882 = vweird.f32 %v876
    %vm883 = vmor %vm881, %vm882
    %v884 = vsel %vm883, %v876, %v880
    %v885 = vand.u32 2147483647, %v875
    %vm886 = vcmp.eq.f32.partialorder %v885, 8.507059e+37
    %v887 = vand.u32 %v875, 2147483648
    %v888 = vor.u32 1.1754944e-38, %v887
    %v889 = vsel %vm886, %v888, %v884
    %v890 = vmul.f32 1.0, %v889
    %v891 = vadd.f32 %v869, %v281
    %893 = vrot.lane.b32.xlu0 %v891, 64
    %v894 = vpop.permute.xlu0 %893
    %v896 = vmul.f32 %v890, %v894
    %898 = vrot.lane.b32.xlu0 %v896, 64
    %v899 = vpop.permute.xlu0 %898
    %v901 = vadd.f32 %v844, %v899
    %v902 = vtanh.pop %v901
    %v903 = vsub.f32 1.0, %v890
    %905 = vrot.lane.b32.xlu0 %v902, 96
    %v906 = vpop.permute.xlu0 %905
    %v908 = vmul.f32 %v903, %v906
    %v909 = vmul.f32 %v890, %v758
    %v910 = vadd.f32 %v908, %v909
    %911 = vmatpush.msra.mxu0 0.0
    %912 = vmatpush.msra.mxu0 0.0
    %913 = vmatpush.msra.mxu0 0.0
    %914 = vmatpush.msra.mxu0 0.0
    %915 = vmatpush.msra.mxu0 0.0
    %916 = vmatpush.msra.mxu0 0.0
    %917 = vmatpush.msra.mxu0 0.0
    %918 = vmatpush.msra.mxu0 0.0
    %919 = vmatpush.msra.mxu0 0.0
    %920 = vmatpush.msra.mxu0 0.0
    %921 = vmatpush.msra.mxu0 0.0
    %922 = vmatpush.msra.mxu0 0.0
    %923 = vmatpush.msra.mxu0 %v131
    %924 = vmatpush.msra.mxu0 %v130
    %925 = vmatpush.msra.mxu0 %v129
    %926 = vmatpush.msra.mxu0 %v128
    %927 = vmatmul.f32.gmra.mxu0 %v824
    %v928 = vpop.f32.mrf.mxu0
    %v929 = vadd.f32 0.0, %v928
    %930 = vdwg.mxu0
    %s931 = scalar_lea.vmem [#allocation2], 40
    %v932 = vld [vmem:[%s931] sm:$0xff]
    %v933 = vadd.f32 %v932, %v929
    %v934 = vxor.u32 %v933, 2147483648
    %v935 = vmul.f32 %v934, 1.442695
    %v936 = vpow.pop %v935
    %v937 = vadd.f32 %v936, 1.0
    %v938 = vrcp.pop %v937
    %v939 = vmul.f32 %v937, %v938
    %v940 = vsub.f32 1.0, %v939
    %v941 = vmul.f32 %v938, %v940
    %v942 = vadd.f32 %v938, %v941
    %vm943 = vweird.f32 %v937
    %vm944 = vweird.f32 %v938
    %vm945 = vmor %vm943, %vm944
    %v946 = vsel %vm945, %v938, %v942
    %v947 = vand.u32 2147483647, %v937
    %vm948 = vcmp.eq.f32.partialorder %v947, 8.507059e+37
    %v949 = vand.u32 %v937, 2147483648
    %v950 = vor.u32 1.1754944e-38, %v949
    %v951 = vsel %vm948, %v950, %v946
    %v952 = vmul.f32 1.0, %v951
    %v953 = vadd.f32 %v929, %v180
    %955 = vrot.lane.b32.xlu0 %v953, 64
    %v956 = vpop.permute.xlu0 %955
    %v958 = vmul.f32 %v952, %v956
    %960 = vrot.lane.b32.xlu0 %v958, 64
    %v961 = vpop.permute.xlu0 %960
    %v963 = vadd.f32 %v932, %v961
    %v964 = vtanh.pop %v963
    %v965 = vsub.f32 1.0, %v952
    %967 = vrot.lane.b32.xlu0 %v964, 96
    %v968 = vpop.permute.xlu0 %967
    %v970 = vmul.f32 %v965, %v968
    %v971 = vmul.f32 %v952, %v820
    %v972 = vadd.f32 %v970, %v971
    %974 = vrot.lane.b32.xlu0 %v972, 96
    %v975 = vpop.permute.xlu0 %974
    %v976 = vsel %vm132, %v975, 0
    %978 = vmatpush.msra.mxu0 0.0
    %979 = vmatpush.msra.mxu0 0.0
    %980 = vmatpush.msra.mxu0 0.0
    %981 = vmatpush.msra.mxu0 0.0
    %982 = vmatpush.msra.mxu0 0.0
    %983 = vmatpush.msra.mxu0 0.0
    %984 = vmatpush.msra.mxu0 0.0
    %985 = vmatpush.msra.mxu0 0.0
    %986 = vmatpush.msra.mxu0 0.0
    %987 = vmatpush.msra.mxu0 0.0
    %988 = vmatpush.msra.mxu0 0.0
    %989 = vmatpush.msra.mxu0 0.0
    %990 = vmatpush.msra.mxu0 %v205
    %991 = vmatpush.msra.mxu0 %v204
    %992 = vmatpush.msra.mxu0 %v203
    %993 = vmatpush.msra.mxu0 %v202
    %994 = vmatmul.f32.gmra.mxu0 %v976
    %v995 = vpop.f32.mrf.mxu0
    %v996 = vadd.f32 %v207, %v995
    %997 = vdwg.mxu0
    %999 = vrot.lane.b32.xlu0 %v910, 96
    %v1000 = vpop.permute.xlu0 %999
    %v1001 = vsel %vm132, %v1000, 0
    %1003 = vmatpush.msra.mxu0 0.0
    %1004 = vmatpush.msra.mxu0 0.0
    %1005 = vmatpush.msra.mxu0 0.0
    %1006 = vmatpush.msra.mxu0 0.0
    %1007 = vmatpush.msra.mxu0 0.0
    %1008 = vmatpush.msra.mxu0 0.0
    %1009 = vmatpush.msra.mxu0 0.0
    %1010 = vmatpush.msra.mxu0 0.0
    %1011 = vmatpush.msra.mxu0 0.0
    %1012 = vmatpush.msra.mxu0 0.0
    %1013 = vmatpush.msra.mxu0 0.0
    %1014 = vmatpush.msra.mxu0 0.0
    %1015 = vmatpush.msra.mxu0 %v237
    %1016 = vmatpush.msra.mxu0 %v236
    %1017 = vmatpush.msra.mxu0 %v235
    %1018 = vmatpush.msra.mxu0 %v234
    %1019 = vmatmul.f32.gmra.mxu0 %v1001
    %v1020 = vpop.f32.mrf.mxu0
    %v1021 = vadd.f32 0.0, %v1020
    %1022 = vdwg.mxu0
    %v1023 = vadd.f32 %v996, %v1021
    %v1024 = vxor.u32 %v1023, 2147483648
    %v1025 = vmul.f32 %v1024, 1.442695
    %v1026 = vpow.pop %v1025
    %v1027 = vadd.f32 %v1026, 1.0
    %v1028 = vrcp.pop %v1027
    %v1029 = vmul.f32 %v1027, %v1028
    %v1030 = vsub.f32 1.0, %v1029
    %v1031 = vmul.f32 %v1028, %v1030
    %v1032 = vadd.f32 %v1028, %v1031
    %vm1033 = vweird.f32 %v1027
    %vm1034 = vweird.f32 %v1028
    %vm1035 = vmor %vm1033, %vm1034
    %v1036 = vsel %vm1035, %v1028, %v1032
    %v1037 = vand.u32 2147483647, %v1027
    %vm1038 = vcmp.eq.f32.partialorder %v1037, 8.507059e+37
    %v1039 = vand.u32 %v1027, 2147483648
    %v1040 = vor.u32 1.1754944e-38, %v1039
    %v1041 = vsel %vm1038, %v1040, %v1036
    %v1042 = vmul.f32 1.0, %v1041
    %v1043 = vadd.f32 %v1021, %v281
    %1045 = vrot.lane.b32.xlu0 %v1043, 64
    %v1046 = vpop.permute.xlu0 %1045
    %v1048 = vmul.f32 %v1042, %v1046
    %1050 = vrot.lane.b32.xlu0 %v1048, 64
    %v1051 = vpop.permute.xlu0 %1050
    %v1053 = vadd.f32 %v996, %v1051
    %v1054 = vtanh.pop %v1053
    %v1055 = vsub.f32 1.0, %v1042
    %1057 = vrot.lane.b32.xlu0 %v1054, 96
    %v1058 = vpop.permute.xlu0 %1057
    %v1060 = vmul.f32 %v1055, %v1058
    %v1061 = vmul.f32 %v1042, %v910
    %v1062 = vadd.f32 %v1060, %v1061
    %1063 = vmatpush.msra.mxu0 0.0
    %1064 = vmatpush.msra.mxu0 0.0
    %1065 = vmatpush.msra.mxu0 0.0
    %1066 = vmatpush.msra.mxu0 0.0
    %1067 = vmatpush.msra.mxu0 0.0
    %1068 = vmatpush.msra.mxu0 0.0
    %1069 = vmatpush.msra.mxu0 0.0
    %1070 = vmatpush.msra.mxu0 0.0
    %1071 = vmatpush.msra.mxu0 0.0
    %1072 = vmatpush.msra.mxu0 0.0
    %1073 = vmatpush.msra.mxu0 0.0
    %1074 = vmatpush.msra.mxu0 0.0
    %1075 = vmatpush.msra.mxu0 %v131
    %1076 = vmatpush.msra.mxu0 %v130
    %1077 = vmatpush.msra.mxu0 %v129
    %1078 = vmatpush.msra.mxu0 %v128
    %1079 = vmatmul.f32.gmra.mxu0 %v976
    %v1080 = vpop.f32.mrf.mxu0
    %v1081 = vadd.f32 0.0, %v1080
    %1082 = vdwg.mxu0
    %s1083 = scalar_lea.vmem [#allocation2], 48
    %v1084 = vld [vmem:[%s1083] sm:$0xff]
    %v1085 = vadd.f32 %v1084, %v1081
    %v1086 = vxor.u32 %v1085, 2147483648
    %v1087 = vmul.f32 %v1086, 1.442695
    %v1088 = vpow.pop %v1087
    %v1089 = vadd.f32 %v1088, 1.0
    %v1090 = vrcp.pop %v1089
    %v1091 = vmul.f32 %v1089, %v1090
    %v1092 = vsub.f32 1.0, %v1091
    %v1093 = vmul.f32 %v1090, %v1092
    %v1094 = vadd.f32 %v1090, %v1093
    %vm1095 = vweird.f32 %v1089
    %vm1096 = vweird.f32 %v1090
    %vm1097 = vmor %vm1095, %vm1096
    %v1098 = vsel %vm1097, %v1090, %v1094
    %v1099 = vand.u32 2147483647, %v1089
    %vm1100 = vcmp.eq.f32.partialorder %v1099, 8.507059e+37
    %v1101 = vand.u32 %v1089, 2147483648
    %v1102 = vor.u32 1.1754944e-38, %v1101
    %v1103 = vsel %vm1100, %v1102, %v1098
    %v1104 = vmul.f32 1.0, %v1103
    %v1105 = vadd.f32 %v1081, %v180
    %1107 = vrot.lane.b32.xlu0 %v1105, 64
    %v1108 = vpop.permute.xlu0 %1107
    %v1110 = vmul.f32 %v1104, %v1108
    %1112 = vrot.lane.b32.xlu0 %v1110, 64
    %v1113 = vpop.permute.xlu0 %1112
    %v1115 = vadd.f32 %v1084, %v1113
    %v1116 = vtanh.pop %v1115
    %v1117 = vsub.f32 1.0, %v1104
    %1119 = vrot.lane.b32.xlu0 %v1116, 96
    %v1120 = vpop.permute.xlu0 %1119
    %v1122 = vmul.f32 %v1117, %v1120
    %v1123 = vmul.f32 %v1104, %v972
    %v1124 = vadd.f32 %v1122, %v1123
    %1126 = vrot.lane.b32.xlu0 %v1124, 96
    %v1127 = vpop.permute.xlu0 %1126
    %v1128 = vsel %vm132, %v1127, 0
    %1130 = vmatpush.msra.mxu0 0.0
    %1131 = vmatpush.msra.mxu0 0.0
    %1132 = vmatpush.msra.mxu0 0.0
    %1133 = vmatpush.msra.mxu0 0.0
    %1134 = vmatpush.msra.mxu0 0.0
    %1135 = vmatpush.msra.mxu0 0.0
    %1136 = vmatpush.msra.mxu0 0.0
    %1137 = vmatpush.msra.mxu0 0.0
    %1138 = vmatpush.msra.mxu0 0.0
    %1139 = vmatpush.msra.mxu0 0.0
    %1140 = vmatpush.msra.mxu0 0.0
    %1141 = vmatpush.msra.mxu0 0.0
    %1142 = vmatpush.msra.mxu0 %v205
    %1143 = vmatpush.msra.mxu0 %v204
    %1144 = vmatpush.msra.mxu0 %v203
    %1145 = vmatpush.msra.mxu0 %v202
    %1146 = vmatmul.f32.gmra.mxu0 %v1128
    %v1147 = vpop.f32.mrf.mxu0
    %v1148 = vadd.f32 %v207, %v1147
    %1149 = vdwg.mxu0
    %1151 = vrot.lane.b32.xlu0 %v1062, 96
    %v1152 = vpop.permute.xlu0 %1151
    %v1153 = vsel %vm132, %v1152, 0
    %1155 = vmatpush.msra.mxu0 0.0
    %1156 = vmatpush.msra.mxu0 0.0
    %1157 = vmatpush.msra.mxu0 0.0
    %1158 = vmatpush.msra.mxu0 0.0
    %1159 = vmatpush.msra.mxu0 0.0
    %1160 = vmatpush.msra.mxu0 0.0
    %1161 = vmatpush.msra.mxu0 0.0
    %1162 = vmatpush.msra.mxu0 0.0
    %1163 = vmatpush.msra.mxu0 0.0
    %1164 = vmatpush.msra.mxu0 0.0
    %1165 = vmatpush.msra.mxu0 0.0
    %1166 = vmatpush.msra.mxu0 0.0
    %1167 = vmatpush.msra.mxu0 %v237
    %1168 = vmatpush.msra.mxu0 %v236
    %1169 = vmatpush.msra.mxu0 %v235
    %1170 = vmatpush.msra.mxu0 %v234
    %1171 = vmatmul.f32.gmra.mxu0 %v1153
    %v1172 = vpop.f32.mrf.mxu0
    %v1173 = vadd.f32 0.0, %v1172
    %1174 = vdwg.mxu0
    %v1175 = vadd.f32 %v1148, %v1173
    %v1176 = vxor.u32 %v1175, 2147483648
    %v1177 = vmul.f32 %v1176, 1.442695
    %v1178 = vpow.pop %v1177
    %v1179 = vadd.f32 %v1178, 1.0
    %v1180 = vrcp.pop %v1179
    %v1181 = vmul.f32 %v1179, %v1180
    %v1182 = vsub.f32 1.0, %v1181
    %v1183 = vmul.f32 %v1180, %v1182
    %v1184 = vadd.f32 %v1180, %v1183
    %vm1185 = vweird.f32 %v1179
    %vm1186 = vweird.f32 %v1180
    %vm1187 = vmor %vm1185, %vm1186
    %v1188 = vsel %vm1187, %v1180, %v1184
    %v1189 = vand.u32 2147483647, %v1179
    %vm1190 = vcmp.eq.f32.partialorder %v1189, 8.507059e+37
    %v1191 = vand.u32 %v1179, 2147483648
    %v1192 = vor.u32 1.1754944e-38, %v1191
    %v1193 = vsel %vm1190, %v1192, %v1188
    %v1194 = vmul.f32 1.0, %v1193
    %v1195 = vadd.f32 %v1173, %v281
    %1197 = vrot.lane.b32.xlu0 %v1195, 64
    %v1198 = vpop.permute.xlu0 %1197
    %v1200 = vmul.f32 %v1194, %v1198
    %1202 = vrot.lane.b32.xlu0 %v1200, 64
    %v1203 = vpop.permute.xlu0 %1202
    %v1205 = vadd.f32 %v1148, %v1203
    %v1206 = vtanh.pop %v1205
    %v1207 = vsub.f32 1.0, %v1194
    %1209 = vrot.lane.b32.xlu0 %v1206, 96
    %v1210 = vpop.permute.xlu0 %1209
    %v1212 = vmul.f32 %v1207, %v1210
    %v1213 = vmul.f32 %v1194, %v1062
    %v1214 = vadd.f32 %v1212, %v1213
    %1215 = vmatpush.msra.mxu0 0.0
    %1216 = vmatpush.msra.mxu0 0.0
    %1217 = vmatpush.msra.mxu0 0.0
    %1218 = vmatpush.msra.mxu0 0.0
    %1219 = vmatpush.msra.mxu0 0.0
    %1220 = vmatpush.msra.mxu0 0.0
    %1221 = vmatpush.msra.mxu0 0.0
    %1222 = vmatpush.msra.mxu0 0.0
    %1223 = vmatpush.msra.mxu0 0.0
    %1224 = vmatpush.msra.mxu0 0.0
    %1225 = vmatpush.msra.mxu0 0.0
    %1226 = vmatpush.msra.mxu0 0.0
    %1227 = vmatpush.msra.mxu0 %v131
    %1228 = vmatpush.msra.mxu0 %v130
    %1229 = vmatpush.msra.mxu0 %v129
    %1230 = vmatpush.msra.mxu0 %v128
    %1231 = vmatmul.f32.gmra.mxu0 %v1128
    %v1232 = vpop.f32.mrf.mxu0
    %v1233 = vadd.f32 0.0, %v1232
    %1234 = vdwg.mxu0
    %s1235 = scalar_lea.vmem [#allocation2], 56
    %v1236 = vld [vmem:[%s1235] sm:$0xff]
    %v1237 = vadd.f32 %v1236, %v1233
    %v1238 = vxor.u32 %v1237, 2147483648
    %v1239 = vmul.f32 %v1238, 1.442695
    %v1240 = vpow.pop %v1239
    %v1241 = vadd.f32 %v1240, 1.0
    %v1242 = vrcp.pop %v1241
    %v1243 = vmul.f32 %v1241, %v1242
    %v1244 = vsub.f32 1.0, %v1243
    %v1245 = vmul.f32 %v1242, %v1244
    %v1246 = vadd.f32 %v1242, %v1245
    %vm1247 = vweird.f32 %v1241
    %vm1248 = vweird.f32 %v1242
    %vm1249 = vmor %vm1247, %vm1248
    %v1250 = vsel %vm1249, %v1242, %v1246
    %v1251 = vand.u32 2147483647, %v1241
    %vm1252 = vcmp.eq.f32.partialorder %v1251, 8.507059e+37
    %v1253 = vand.u32 %v1241, 2147483648
    %v1254 = vor.u32 1.1754944e-38, %v1253
    %v1255 = vsel %vm1252, %v1254, %v1250
    %v1256 = vmul.f32 1.0, %v1255
    %v1257 = vadd.f32 %v1233, %v180
    %1259 = vrot.lane.b32.xlu0 %v1257, 64
    %v1260 = vpop.permute.xlu0 %1259
    %v1262 = vmul.f32 %v1256, %v1260
    %1264 = vrot.lane.b32.xlu0 %v1262, 64
    %v1265 = vpop.permute.xlu0 %1264
    %v1267 = vadd.f32 %v1236, %v1265
    %v1268 = vtanh.pop %v1267
    %v1269 = vsub.f32 1.0, %v1256
    %1271 = vrot.lane.b32.xlu0 %v1268, 96
    %v1272 = vpop.permute.xlu0 %1271
    %v1274 = vmul.f32 %v1269, %v1272
    %v1275 = vmul.f32 %v1256, %v1124
    %v1276 = vadd.f32 %v1274, %v1275
    %1278 = vrot.lane.b32.xlu0 %v1276, 96
    %v1279 = vpop.permute.xlu0 %1278
    %v1280 = vsel %vm132, %v1279, 0
    %1282 = vmatpush.msra.mxu0 0.0
    %1283 = vmatpush.msra.mxu0 0.0
    %1284 = vmatpush.msra.mxu0 0.0
    %1285 = vmatpush.msra.mxu0 0.0
    %1286 = vmatpush.msra.mxu0 0.0
    %1287 = vmatpush.msra.mxu0 0.0
    %1288 = vmatpush.msra.mxu0 0.0
    %1289 = vmatpush.msra.mxu0 0.0
    %1290 = vmatpush.msra.mxu0 0.0
    %1291 = vmatpush.msra.mxu0 0.0
    %1292 = vmatpush.msra.mxu0 0.0
    %1293 = vmatpush.msra.mxu0 0.0
    %1294 = vmatpush.msra.mxu0 %v205
    %1295 = vmatpush.msra.mxu0 %v204
    %1296 = vmatpush.msra.mxu0 %v203
    %1297 = vmatpush.msra.mxu0 %v202
    %1298 = vmatmul.f32.gmra.mxu0 %v1280
    %v1299 = vpop.f32.mrf.mxu0
    %v1300 = vadd.f32 %v207, %v1299
    %1301 = vdwg.mxu0
    %1303 = vrot.lane.b32.xlu0 %v1214, 96
    %v1304 = vpop.permute.xlu0 %1303
    %v1305 = vsel %vm132, %v1304, 0
    %1307 = vmatpush.msra.mxu0 0.0
    %1308 = vmatpush.msra.mxu0 0.0
    %1309 = vmatpush.msra.mxu0 0.0
    %1310 = vmatpush.msra.mxu0 0.0
    %1311 = vmatpush.msra.mxu0 0.0
    %1312 = vmatpush.msra.mxu0 0.0
    %1313 = vmatpush.msra.mxu0 0.0
    %1314 = vmatpush.msra.mxu0 0.0
    %1315 = vmatpush.msra.mxu0 0.0
    %1316 = vmatpush.msra.mxu0 0.0
    %1317 = vmatpush.msra.mxu0 0.0
    %1318 = vmatpush.msra.mxu0 0.0
    %1319 = vmatpush.msra.mxu0 %v237
    %1320 = vmatpush.msra.mxu0 %v236
    %1321 = vmatpush.msra.mxu0 %v235
    %1322 = vmatpush.msra.mxu0 %v234
    %1323 = vmatmul.f32.gmra.mxu0 %v1305
    %v1324 = vpop.f32.mrf.mxu0
    %v1325 = vadd.f32 0.0, %v1324
    %1326 = vdwg.mxu0
    %v1327 = vadd.f32 %v1300, %v1325
    %v1328 = vxor.u32 %v1327, 2147483648
    %v1329 = vmul.f32 %v1328, 1.442695
    %v1330 = vpow.pop %v1329
    %v1331 = vadd.f32 %v1330, 1.0
    %v1332 = vrcp.pop %v1331
    %v1333 = vmul.f32 %v1331, %v1332
    %v1334 = vsub.f32 1.0, %v1333
    %v1335 = vmul.f32 %v1332, %v1334
    %v1336 = vadd.f32 %v1332, %v1335
    %vm1337 = vweird.f32 %v1331
    %vm1338 = vweird.f32 %v1332
    %vm1339 = vmor %vm1337, %vm1338
    %v1340 = vsel %vm1339, %v1332, %v1336
    %v1341 = vand.u32 2147483647, %v1331
    %vm1342 = vcmp.eq.f32.partialorder %v1341, 8.507059e+37
    %v1343 = vand.u32 %v1331, 2147483648
    %v1344 = vor.u32 1.1754944e-38, %v1343
    %v1345 = vsel %vm1342, %v1344, %v1340
    %v1346 = vmul.f32 1.0, %v1345
    %v1347 = vadd.f32 %v1325, %v281
    %1349 = vrot.lane.b32.xlu0 %v1347, 64
    %v1350 = vpop.permute.xlu0 %1349
    %v1352 = vmul.f32 %v1346, %v1350
    %1354 = vrot.lane.b32.xlu0 %v1352, 64
    %v1355 = vpop.permute.xlu0 %1354
    %v1357 = vadd.f32 %v1300, %v1355
    %v1358 = vtanh.pop %v1357
    %v1359 = vsub.f32 1.0, %v1346
    %1361 = vrot.lane.b32.xlu0 %v1358, 96
    %v1362 = vpop.permute.xlu0 %1361
    %v1364 = vmul.f32 %v1359, %v1362
    %v1365 = vmul.f32 %v1346, %v1214
    %v1366 = vadd.f32 %v1364, %v1365
    %1368 = vrot.lane.b32.xlu0 %v1366, 96
    %v1369 = vpop.permute.xlu0 %1368
    %1371 = vst.msk [vmem:[#allocation3] sm:$0xff] %vm132, %v1369
    // Predicated region
    $region38: #{tpu_custom_call.1} parent=1 // pred_check
      _
    $region39: #{tpu_custom_call.1} parent=1 // pred_check_branch
      %1373 = sbr.rel (0) target = $region41
    $region40: #{tpu_custom_call.1} parent=1 // pred_region
      %1375 = vsyncadd [#allocation4], 0
      %s1377 = sshll.u32 [#allocation3], 4
      %s1378 = int_to_ptr.vmem [resolvable:$true] %s1377
      %s1379 = sshll.u32 %s9, 4
      %s1380 = int_to_ptr.hbm [resolvable:$true] %s1379
      %1382 = dma.vmem_to_hbm [thread:$0]  %s1378, 128, %s1380, [#allocation4]
    $region41: #{tpu_custom_call.1} parent=1 // pred_fallthru
      _
    // Predicated region
    $region42: #{tpu_custom_call.1} parent=1 // pred_check
      _
    $region43: #{tpu_custom_call.1} parent=1 // pred_check_branch
      %1384 = sbr.rel (0) target = $region45
    $region44: #{tpu_custom_call.1} parent=1 // pred_region
      %1386 = dma.done [#allocation4], 128
    $region45: #{tpu_custom_call.1} parent=1 // pred_fallthru
      _
    %1387 = vsyncpa [#allocation4], 1

</llo_original>
